<compile_context>
chip_gen: v7x
topology: tpu7x:2x2x1
jax: 0.10.0
libtpu: 0.0.40
codegen_flags: <defaults>
</compile_context>

<pallas_src>
import math

import jax
import jax.numpy as jnp
from jax.experimental import pallas as pl
from jax.experimental.pallas import tpu as pltpu


# OGB full_atom_feature_dims (ogb.utils.features.get_atom_feature_dims())
FULL_ATOM_FEATURE_DIMS = [119, 5, 12, 12, 10, 6, 6, 2, 2]
NUM_FEATURES = len(FULL_ATOM_FEATURE_DIMS)

GROUP = 128           # lane-aligned vocab group width
VPAD = 2 * GROUP      # fused-table rows: group 0 = feature 0, group 1 = features 1..8

# Static within-group row offsets for features 1..8 (cumulative vocab sizes).
_g1 = [0]
for _d in FULL_ATOM_FEATURE_DIMS[1:-1]:
    _g1.append(_g1[-1] + _d)
GROUP1_OFFSETS = tuple(_g1)                      # len == NUM_FEATURES - 1

assert FULL_ATOM_FEATURE_DIMS[0] <= GROUP
assert GROUP1_OFFSETS[-1] + FULL_ATOM_FEATURE_DIMS[-1] <= GROUP


def atom_encoder_kernel(idx_ref, table_ref, out_ref):
    """Per node-tile: two 128-lane one-hot groups, two small MXU matmuls.

    idx_ref   : [tm, F]   int32 raw categorical ids (offsets are static here)
    table_ref : [256, E]  float32 fused embedding table (2 groups of 128 rows)
    out_ref   : [tm, E]   float32
    """
    tm = out_ref.shape[0]
    ids = idx_ref[...]                                          # [tm, F] int32
    col = jax.lax.broadcasted_iota(jnp.int32, (tm, GROUP), 1)   # [tm, 128]

    # Group 0: feature 0 only (vocab 119 < 128).  Single compare + single cast.
    hot0 = (col == ids[:, 0:1]).astype(jnp.float32)             # [tm, 128]

    # Group 1: features 1..8 occupy disjoint sub-ranges of the 128 lanes, so
    # the per-feature matches can be OR-combined as booleans; convert to float
    # exactly once at the end.
    m1 = col == (ids[:, 1:2] + GROUP1_OFFSETS[0])
    for f in range(2, NUM_FEATURES):                            # static unroll (7 iters)
        m1 = m1 | (col == (ids[:, f:f + 1] + GROUP1_OFFSETS[f - 1]))
    hot1 = m1.astype(jnp.float32)                               # [tm, 128]

    # (one-hot @ table-slice) per group == sum_i Embedding_i(x[:, i]).
    out_ref[...] = (
        jnp.dot(hot0, table_ref[0:GROUP, :],
                preferred_element_type=jnp.float32)
        + jnp.dot(hot1, table_ref[GROUP:VPAD, :],
                  preferred_element_type=jnp.float32)
    )


def atom_encoder_forward(x_idx, fused_table, *, tm=256):
    """x_idx: [N, F] integer ids, fused_table: [256, E] f32 -> [N, E] f32."""
    N, F = x_idx.shape
    assert F == NUM_FEATURES
    Vp, E = fused_table.shape
    assert Vp == VPAD

    # Pad the node dimension up to a multiple of the node tile.  Padded rows
    # carry id 0 and therefore hit real table rows -> they MUST be sliced off.
    n_pad = ((N + tm - 1) // tm) * tm
    x_pad = jnp.pad(x_idx.astype(jnp.int32), ((0, n_pad - N), (0, 0)))

    out = pl.pallas_call(
        atom_encoder_kernel,
        out_shape=jax.ShapeDtypeStruct((n_pad, E), jnp.float32),
        grid_spec=pltpu.PrefetchScalarGridSpec(
            num_scalar_prefetch=0,
            grid=(n_pad // tm,),
            in_specs=[
                pl.BlockSpec((tm, F), lambda i: (i, 0)),     # node-id tile
                pl.BlockSpec((VPAD, E), lambda i: (0, 0)),   # whole fused table
            ],
            out_specs=pl.BlockSpec((tm, E), lambda i: (i, 0)),
        ),
        compiler_params=pltpu.CompilerParams(
            dimension_semantics=("parallel",)),
    )(x_pad, fused_table)

    return out[:N]


def build_params(emb_dim, key):
    """Xavier-uniform init per embedding table (as in AtomEncoder.__init__),
    placed into a [256, emb_dim] fused table with 128-aligned groups."""
    tables = []
    for i, dim in enumerate(FULL_ATOM_FEATURE_DIMS):
        k = jax.random.fold_in(key, i)
        # torch.nn.init.xavier_uniform_ on weight [dim, emb_dim]
        bound = math.sqrt(6.0 / (dim + emb_dim))
        w = jax.random.uniform(k, (dim, emb_dim), jnp.float32, -bound, bound)
        tables.append(w)

    fused = jnp.zeros((VPAD, emb_dim), jnp.float32)
    fused = fused.at[0:FULL_ATOM_FEATURE_DIMS[0]].set(tables[0])     # group 0
    for f in range(1, NUM_FEATURES):                                 # group 1
        start = GROUP + GROUP1_OFFSETS[f - 1]
        fused = fused.at[start:start + FULL_ATOM_FEATURE_DIMS[f]].set(tables[f])
    return fused, tables


if __name__ == "__main__":
    emb_dim = 32          # E (hidden)
    num_nodes = 16        # N (small demo shape; wrapper pads to the node tile)

    key = jax.random.PRNGKey(0)
    k_params, k_x = jax.random.split(key)

    fused_table, tables = build_params(emb_dim, k_params)

    # Deterministic categorical node features, each column within its vocab.
    maxvals = jnp.array(FULL_ATOM_FEATURE_DIMS, dtype=jnp.int32)
    u = jax.random.uniform(k_x, (num_nodes, NUM_FEATURES))
    x = jnp.floor(u * maxvals[None, :].astype(jnp.float32)).astype(jnp.int32)
    x = jnp.clip(x, 0, maxvals[None, :] - 1)

    out = atom_encoder_forward(x, fused_table, tm=256)
    out = jax.block_until_ready(out)

    # Pure-JAX reference: sum_i table_i[x[:, i]]
    ref = jnp.zeros((num_nodes, emb_dim), jnp.float32)
    for i, t in enumerate(tables):
        ref = ref + jnp.take(t, x[:, i], axis=0)

    assert out.shape == (num_nodes, emb_dim)
    assert jnp.allclose(out, ref, atol=1e-5, rtol=1e-5)
    print("KERNEL_OK")
</pallas_src>

<mosaic_0001>
module attributes {stable_mosaic.version = 11 : i64} {
  func.func @atom_encoder_kernel(%arg0: i32, %arg1: memref<256x9xi32, #tpu.memory_space<vmem>>, %arg2: memref<256x32xf32, #tpu.memory_space<vmem>>, %arg3: memref<256x32xf32, #tpu.memory_space<vmem>>) attributes {dimension_semantics = [#tpu.dimension_semantics<parallel>], iteration_bounds = array<i64: 1>, scalar_prefetch = 0 : i64, scratch_operands = 0 : i64, tpu.core_type = #tpu.core_type<tc>, window_params = [{transform_indices = @transform_0, window_bounds = array<i64: 256, 9>}, {pipeline_mode = #tpu.pipeline_mode<synchronous>, transform_indices = @transform_1, window_bounds = array<i64: 256, 32>}, {transform_indices = @transform_2, window_bounds = array<i64: 256, 32>}]} {
    %c0 = arith.constant 0 : index
    %c0_0 = arith.constant 0 : index
    %0 = vector.load %arg1[%c0, %c0_0] : memref<256x9xi32, #tpu.memory_space<vmem>>, vector<256x9xi32>
    %1 = tpu.iota {dimensions = array<i32: 1>} : vector<256x128xi32>
    %2 = vector.extract_strided_slice %0 {offsets = [0, 0], sizes = [256, 1], strides = [1, 1]} : vector<256x9xi32> to vector<256x1xi32>
    %3 = vector.broadcast %2 : vector<256x1xi32> to vector<256x128xi32>
    %4 = arith.cmpi eq, %1, %3 : vector<256x128xi32>
    %5 = arith.extui %4 : vector<256x128xi1> to vector<256x128xi32>
    %6 = arith.sitofp %5 : vector<256x128xi32> to vector<256x128xf32>
    %7 = vector.extract_strided_slice %0 {offsets = [0, 1], sizes = [256, 1], strides = [1, 1]} : vector<256x9xi32> to vector<256x1xi32>
    %c0_i32 = arith.constant 0 : i32
    %8 = vector.broadcast %c0_i32 : i32 to vector<256x1xi32>
    %9 = arith.addi %7, %8 : vector<256x1xi32>
    %10 = vector.broadcast %9 : vector<256x1xi32> to vector<256x128xi32>
    %11 = arith.cmpi eq, %1, %10 : vector<256x128xi32>
    %12 = vector.extract_strided_slice %0 {offsets = [0, 2], sizes = [256, 1], strides = [1, 1]} : vector<256x9xi32> to vector<256x1xi32>
    %c5_i32 = arith.constant 5 : i32
    %13 = vector.broadcast %c5_i32 : i32 to vector<256x1xi32>
    %14 = arith.addi %12, %13 : vector<256x1xi32>
    %15 = vector.broadcast %14 : vector<256x1xi32> to vector<256x128xi32>
    %16 = arith.cmpi eq, %1, %15 : vector<256x128xi32>
    %17 = arith.ori %11, %16 : vector<256x128xi1>
    %18 = vector.extract_strided_slice %0 {offsets = [0, 3], sizes = [256, 1], strides = [1, 1]} : vector<256x9xi32> to vector<256x1xi32>
    %c17_i32 = arith.constant 17 : i32
    %19 = vector.broadcast %c17_i32 : i32 to vector<256x1xi32>
    %20 = arith.addi %18, %19 : vector<256x1xi32>
    %21 = vector.broadcast %20 : vector<256x1xi32> to vector<256x128xi32>
    %22 = arith.cmpi eq, %1, %21 : vector<256x128xi32>
    %23 = arith.ori %17, %22 : vector<256x128xi1>
    %24 = vector.extract_strided_slice %0 {offsets = [0, 4], sizes = [256, 1], strides = [1, 1]} : vector<256x9xi32> to vector<256x1xi32>
    %c29_i32 = arith.constant 29 : i32
    %25 = vector.broadcast %c29_i32 : i32 to vector<256x1xi32>
    %26 = arith.addi %24, %25 : vector<256x1xi32>
    %27 = vector.broadcast %26 : vector<256x1xi32> to vector<256x128xi32>
    %28 = arith.cmpi eq, %1, %27 : vector<256x128xi32>
    %29 = arith.ori %23, %28 : vector<256x128xi1>
    %30 = vector.extract_strided_slice %0 {offsets = [0, 5], sizes = [256, 1], strides = [1, 1]} : vector<256x9xi32> to vector<256x1xi32>
    %c39_i32 = arith.constant 39 : i32
    %31 = vector.broadcast %c39_i32 : i32 to vector<256x1xi32>
    %32 = arith.addi %30, %31 : vector<256x1xi32>
    %33 = vector.broadcast %32 : vector<256x1xi32> to vector<256x128xi32>
    %34 = arith.cmpi eq, %1, %33 : vector<256x128xi32>
    %35 = arith.ori %29, %34 : vector<256x128xi1>
    %36 = vector.extract_strided_slice %0 {offsets = [0, 6], sizes = [256, 1], strides = [1, 1]} : vector<256x9xi32> to vector<256x1xi32>
    %c45_i32 = arith.constant 45 : i32
    %37 = vector.broadcast %c45_i32 : i32 to vector<256x1xi32>
    %38 = arith.addi %36, %37 : vector<256x1xi32>
    %39 = vector.broadcast %38 : vector<256x1xi32> to vector<256x128xi32>
    %40 = arith.cmpi eq, %1, %39 : vector<256x128xi32>
    %41 = arith.ori %35, %40 : vector<256x128xi1>
    %42 = vector.extract_strided_slice %0 {offsets = [0, 7], sizes = [256, 1], strides = [1, 1]} : vector<256x9xi32> to vector<256x1xi32>
    %c51_i32 = arith.constant 51 : i32
    %43 = vector.broadcast %c51_i32 : i32 to vector<256x1xi32>
    %44 = arith.addi %42, %43 : vector<256x1xi32>
    %45 = vector.broadcast %44 : vector<256x1xi32> to vector<256x128xi32>
    %46 = arith.cmpi eq, %1, %45 : vector<256x128xi32>
    %47 = arith.ori %41, %46 : vector<256x128xi1>
    %48 = vector.extract_strided_slice %0 {offsets = [0, 8], sizes = [256, 1], strides = [1, 1]} : vector<256x9xi32> to vector<256x1xi32>
    %c53_i32 = arith.constant 53 : i32
    %49 = vector.broadcast %c53_i32 : i32 to vector<256x1xi32>
    %50 = arith.addi %48, %49 : vector<256x1xi32>
    %51 = vector.broadcast %50 : vector<256x1xi32> to vector<256x128xi32>
    %52 = arith.cmpi eq, %1, %51 : vector<256x128xi32>
    %53 = arith.ori %47, %52 : vector<256x128xi1>
    %54 = arith.extui %53 : vector<256x128xi1> to vector<256x128xi32>
    %55 = arith.sitofp %54 : vector<256x128xi32> to vector<256x128xf32>
    %c0_1 = arith.constant 0 : index
    %c0_2 = arith.constant 0 : index
    %56 = vector.load %arg2[%c0_1, %c0_2] : memref<256x32xf32, #tpu.memory_space<vmem>>, vector<128x32xf32>
    %cst = arith.constant dense<0.000000e+00> : vector<256x32xf32>
    %57 = tpu.matmul %6, %56, %cst {dimension_numbers = #tpu.dot_dimension_numbers<[1], [0], [0], [1], [0, 0, 1, 1], [], []>} : vector<256x128xf32>, vector<128x32xf32>, vector<256x32xf32> -> vector<256x32xf32>
    %c128 = arith.constant 128 : index
    %c0_3 = arith.constant 0 : index
    %58 = vector.load %arg2[%c128, %c0_3] : memref<256x32xf32, #tpu.memory_space<vmem>>, vector<128x32xf32>
    %cst_4 = arith.constant dense<0.000000e+00> : vector<256x32xf32>
    %59 = tpu.matmul %55, %58, %cst_4 {dimension_numbers = #tpu.dot_dimension_numbers<[1], [0], [0], [1], [0, 0, 1, 1], [], []>} : vector<256x128xf32>, vector<128x32xf32>, vector<256x32xf32> -> vector<256x32xf32>
    %60 = arith.addf %57, %59 : vector<256x32xf32>
    %c0_5 = arith.constant 0 : index
    %c0_6 = arith.constant 0 : index
    %61 = vector.load %arg3[%c0_5, %c0_6] : memref<256x32xf32, #tpu.memory_space<vmem>>, vector<256x32xf32>
    tpu.vector_store %arg3[%c0_5, %c0_6], %60 {strides = array<i32>} : memref<256x32xf32, #tpu.memory_space<vmem>>, vector<256x32xf32>,
    return
  }
  func.func @transform_0(%arg0: i32) -> (i32, i32) {
    %c0_i32 = arith.constant 0 : i32
    %c0_i32_0 = arith.constant 0 : i32
    return %arg0, %c0_i32 : i32, i32
  }
  func.func @transform_1(%arg0: i32) -> (i32, i32) {
    %c0_i32 = arith.constant 0 : i32
    %c0_i32_0 = arith.constant 0 : i32
    %c0_i32_1 = arith.constant 0 : i32
    return %c0_i32, %c0_i32_0 : i32, i32
  }
  func.func @transform_2(%arg0: i32) -> (i32, i32) {
    %c0_i32 = arith.constant 0 : i32
    %c0_i32_0 = arith.constant 0 : i32
    return %arg0, %c0_i32 : i32, i32
  }
}

</mosaic_0001>

<llo_original>
// kernel: tpu_custom_call.1
$region0: #{tpu_custom_call.1}
  #allocation0 [shape = 'u32[]', space=smem, size = 0x4, offset = 0x4, fixed_abs, tag = 'smem constant byte address 0x4 - core index']
  #allocation1 [shape = 'u32[144,128]{1,0:T(1,128)}', space=vmem, size = 0x12000, scoped, tag = 'internal scratch']
  %s0 = inlined_call_operand.vmem [shape: s32[256,9], index: 0, kind: input, shape index: {}]
  %s1 = inlined_call_operand.vmem [shape: f32[256,32], index: 1, kind: input, shape index: {}]
  %s2 = inlined_call_operand.vmem [shape: f32[256,32], index: 2, kind: output, shape index: {}]
  %s3 = sld [smem:[#allocation0]]
  $region18: #{tpu_custom_call.1} parent=0
    _
  %s5 = ssub.s32 1, %s3
  %s6 = scalar_select 0, %s5, %s3
  // Predicated region
  $region2: #{tpu_custom_call.1} parent=0 // pred_check
    _
  $region3: #{tpu_custom_call.1} parent=0 // pred_check_branch
    %8 = sbr.rel (0) target = $region5
  $region4: #{tpu_custom_call.1} parent=0 // pred_region
    _
  $region5: #{tpu_custom_call.1} parent=0 // pred_fallthru
    _
  // Predicated region
  $region6: #{tpu_custom_call.1} parent=0 // pred_check
    _
  $region7: #{tpu_custom_call.1} parent=0 // pred_check_branch
    %10 = sbr.rel (0) target = $region9
  $region8: #{tpu_custom_call.1} parent=0 // pred_region
    _
  $region9: #{tpu_custom_call.1} parent=0 // pred_fallthru
    _
  %v11 = vld [vmem:[%s0] sm:$0xff]
  %v12 = vld [vmem:[%s0 + $0x8] sm:$0xff]
  %v13 = vld [vmem:[%s0 + $0x10] sm:$0xff]
  %v14 = vld [vmem:[%s0 + $0x18] sm:$0xff]
  %v15 = vld [vmem:[%s0 + $0x20] sm:$0xff]
  %v16 = vld [vmem:[%s0 + $0x28] sm:$0xff]
  %v17 = vld [vmem:[%s0 + $0x30] sm:$0xff]
  %v18 = vld [vmem:[%s0 + $0x38] sm:$0xff]
  %v19 = vld [vmem:[%s0 + $0x40] sm:$0xff]
  %v20 = vld [vmem:[%s0 + $0x48] sm:$0xff]
  %v21 = vld [vmem:[%s0 + $0x50] sm:$0xff]
  %v22 = vld [vmem:[%s0 + $0x58] sm:$0xff]
  %v23 = vld [vmem:[%s0 + $0x60] sm:$0xff]
  %v24 = vld [vmem:[%s0 + $0x68] sm:$0xff]
  %v25 = vld [vmem:[%s0 + $0x70] sm:$0xff]
  %v26 = vld [vmem:[%s0 + $0x78] sm:$0xff]
  %v27 = vld [vmem:[%s0 + $0x80] sm:$0xff]
  %v28 = vld [vmem:[%s0 + $0x88] sm:$0xff]
  %v29 = vld [vmem:[%s0 + $0x90] sm:$0xff]
  %v30 = vld [vmem:[%s0 + $0x98] sm:$0xff]
  %v31 = vld [vmem:[%s0 + $0xa0] sm:$0xff]
  %v32 = vld [vmem:[%s0 + $0xa8] sm:$0xff]
  %v33 = vld [vmem:[%s0 + $0xb0] sm:$0xff]
  %v34 = vld [vmem:[%s0 + $0xb8] sm:$0xff]
  %v35 = vld [vmem:[%s0 + $0xc0] sm:$0xff]
  %v36 = vld [vmem:[%s0 + $0xc8] sm:$0xff]
  %v37 = vld [vmem:[%s0 + $0xd0] sm:$0xff]
  %v38 = vld [vmem:[%s0 + $0xd8] sm:$0xff]
  %v39 = vld [vmem:[%s0 + $0xe0] sm:$0xff]
  %v40 = vld [vmem:[%s0 + $0xe8] sm:$0xff]
  %v41 = vld [vmem:[%s0 + $0xf0] sm:$0xff]
  %v42 = vld [vmem:[%s0 + $0xf8] sm:$0xff]
  %v43 = vlaneseq
  %v44 = vand.u32 %v43, 127
  %45 = vset.pattern.permute.xlu0 0
  %46 = vperm.xlu0 %45, %v11
  %v47 = vpop.permute.xlu0 %46
  %48 = vset.pattern.permute.xlu0 0
  %49 = vperm.xlu0 %48, %v12
  %v50 = vpop.permute.xlu0 %49
  %51 = vset.pattern.permute.xlu0 0
  %52 = vperm.xlu0 %51, %v13
  %v53 = vpop.permute.xlu0 %52
  %54 = vset.pattern.permute.xlu0 0
  %55 = vperm.xlu0 %54, %v14
  %v56 = vpop.permute.xlu0 %55
  %57 = vset.pattern.permute.xlu0 0
  %58 = vperm.xlu0 %57, %v15
  %v59 = vpop.permute.xlu0 %58
  %60 = vset.pattern.permute.xlu0 0
  %61 = vperm.xlu0 %60, %v16
  %v62 = vpop.permute.xlu0 %61
  %63 = vset.pattern.permute.xlu0 0
  %64 = vperm.xlu0 %63, %v17
  %v65 = vpop.permute.xlu0 %64
  %66 = vset.pattern.permute.xlu0 0
  %67 = vperm.xlu0 %66, %v18
  %v68 = vpop.permute.xlu0 %67
  %69 = vset.pattern.permute.xlu0 0
  %70 = vperm.xlu0 %69, %v19
  %v71 = vpop.permute.xlu0 %70
  %72 = vset.pattern.permute.xlu0 0
  %73 = vperm.xlu0 %72, %v20
  %v74 = vpop.permute.xlu0 %73
  %75 = vset.pattern.permute.xlu0 0
  %76 = vperm.xlu0 %75, %v21
  %v77 = vpop.permute.xlu0 %76
  %78 = vset.pattern.permute.xlu0 0
  %79 = vperm.xlu0 %78, %v22
  %v80 = vpop.permute.xlu0 %79
  %81 = vset.pattern.permute.xlu0 0
  %82 = vperm.xlu0 %81, %v23
  %v83 = vpop.permute.xlu0 %82
  %84 = vset.pattern.permute.xlu0 0
  %85 = vperm.xlu0 %84, %v24
  %v86 = vpop.permute.xlu0 %85
  %87 = vset.pattern.permute.xlu0 0
  %88 = vperm.xlu0 %87, %v25
  %v89 = vpop.permute.xlu0 %88
  %90 = vset.pattern.permute.xlu0 0
  %91 = vperm.xlu0 %90, %v26
  %v92 = vpop.permute.xlu0 %91
  %93 = vset.pattern.permute.xlu0 0
  %94 = vperm.xlu0 %93, %v27
  %v95 = vpop.permute.xlu0 %94
  %96 = vset.pattern.permute.xlu0 0
  %97 = vperm.xlu0 %96, %v28
  %v98 = vpop.permute.xlu0 %97
  %99 = vset.pattern.permute.xlu0 0
  %100 = vperm.xlu0 %99, %v29
  %v101 = vpop.permute.xlu0 %100
  %102 = vset.pattern.permute.xlu0 0
  %103 = vperm.xlu0 %102, %v30
  %v104 = vpop.permute.xlu0 %103
  %105 = vset.pattern.permute.xlu0 0
  %106 = vperm.xlu0 %105, %v31
  %v107 = vpop.permute.xlu0 %106
  %108 = vset.pattern.permute.xlu0 0
  %109 = vperm.xlu0 %108, %v32
  %v110 = vpop.permute.xlu0 %109
  %111 = vset.pattern.permute.xlu0 0
  %112 = vperm.xlu0 %111, %v33
  %v113 = vpop.permute.xlu0 %112
  %114 = vset.pattern.permute.xlu0 0
  %115 = vperm.xlu0 %114, %v34
  %v116 = vpop.permute.xlu0 %115
  %117 = vset.pattern.permute.xlu0 0
  %118 = vperm.xlu0 %117, %v35
  %v119 = vpop.permute.xlu0 %118
  %120 = vset.pattern.permute.xlu0 0
  %121 = vperm.xlu0 %120, %v36
  %v122 = vpop.permute.xlu0 %121
  %123 = vset.pattern.permute.xlu0 0
  %124 = vperm.xlu0 %123, %v37
  %v125 = vpop.permute.xlu0 %124
  %126 = vset.pattern.permute.xlu0 0
  %127 = vperm.xlu0 %126, %v38
  %v128 = vpop.permute.xlu0 %127
  %129 = vset.pattern.permute.xlu0 0
  %130 = vperm.xlu0 %129, %v39
  %v131 = vpop.permute.xlu0 %130
  %132 = vset.pattern.permute.xlu0 0
  %133 = vperm.xlu0 %132, %v40
  %v134 = vpop.permute.xlu0 %133
  %135 = vset.pattern.permute.xlu0 0
  %136 = vperm.xlu0 %135, %v41
  %v137 = vpop.permute.xlu0 %136
  %138 = vset.pattern.permute.xlu0 0
  %139 = vperm.xlu0 %138, %v42
  %v140 = vpop.permute.xlu0 %139
  %vm141 = vcmp.eq.s32.totalorder %v44, %v47
  %vm142 = vcmp.eq.s32.totalorder %v44, %v50
  %vm143 = vcmp.eq.s32.totalorder %v44, %v53
  %vm144 = vcmp.eq.s32.totalorder %v44, %v56
  %vm145 = vcmp.eq.s32.totalorder %v44, %v59
  %vm146 = vcmp.eq.s32.totalorder %v44, %v62
  %vm147 = vcmp.eq.s32.totalorder %v44, %v65
  %vm148 = vcmp.eq.s32.totalorder %v44, %v68
  %vm149 = vcmp.eq.s32.totalorder %v44, %v71
  %vm150 = vcmp.eq.s32.totalorder %v44, %v74
  %vm151 = vcmp.eq.s32.totalorder %v44, %v77
  %vm152 = vcmp.eq.s32.totalorder %v44, %v80
  %vm153 = vcmp.eq.s32.totalorder %v44, %v83
  %vm154 = vcmp.eq.s32.totalorder %v44, %v86
  %vm155 = vcmp.eq.s32.totalorder %v44, %v89
  %vm156 = vcmp.eq.s32.totalorder %v44, %v92
  %vm157 = vcmp.eq.s32.totalorder %v44, %v95
  %vm158 = vcmp.eq.s32.totalorder %v44, %v98
  %vm159 = vcmp.eq.s32.totalorder %v44, %v101
  %vm160 = vcmp.eq.s32.totalorder %v44, %v104
  %vm161 = vcmp.eq.s32.totalorder %v44, %v107
  %vm162 = vcmp.eq.s32.totalorder %v44, %v110
  %vm163 = vcmp.eq.s32.totalorder %v44, %v113
  %vm164 = vcmp.eq.s32.totalorder %v44, %v116
  %vm165 = vcmp.eq.s32.totalorder %v44, %v119
  %vm166 = vcmp.eq.s32.totalorder %v44, %v122
  %vm167 = vcmp.eq.s32.totalorder %v44, %v125
  %vm168 = vcmp.eq.s32.totalorder %v44, %v128
  %vm169 = vcmp.eq.s32.totalorder %v44, %v131
  %vm170 = vcmp.eq.s32.totalorder %v44, %v134
  %vm171 = vcmp.eq.s32.totalorder %v44, %v137
  %vm172 = vcmp.eq.s32.totalorder %v44, %v140
  %v173 = vsel %vm141, 1, 0
  %v174 = vsel %vm142, 1, 0
  %v175 = vsel %vm143, 1, 0
  %v176 = vsel %vm144, 1, 0
  %v177 = vsel %vm145, 1, 0
  %v178 = vsel %vm146, 1, 0
  %v179 = vsel %vm147, 1, 0
  %v180 = vsel %vm148, 1, 0
  %v181 = vsel %vm149, 1, 0
  %v182 = vsel %vm150, 1, 0
  %v183 = vsel %vm151, 1, 0
  %v184 = vsel %vm152, 1, 0
  %v185 = vsel %vm153, 1, 0
  %v186 = vsel %vm154, 1, 0
  %v187 = vsel %vm155, 1, 0
  %v188 = vsel %vm156, 1, 0
  %v189 = vsel %vm157, 1, 0
  %v190 = vsel %vm158, 1, 0
  %v191 = vsel %vm159, 1, 0
  %v192 = vsel %vm160, 1, 0
  %v193 = vsel %vm161, 1, 0
  %v194 = vsel %vm162, 1, 0
  %v195 = vsel %vm163, 1, 0
  %v196 = vsel %vm164, 1, 0
  %v197 = vsel %vm165, 1, 0
  %v198 = vsel %vm166, 1, 0
  %v199 = vsel %vm167, 1, 0
  %v200 = vsel %vm168, 1, 0
  %v201 = vsel %vm169, 1, 0
  %v202 = vsel %vm170, 1, 0
  %v203 = vsel %vm171, 1, 0
  %v204 = vsel %vm172, 1, 0
  %v205 = vcvt.s32.f32 %v173
  %v206 = vcvt.s32.f32 %v174
  %v207 = vcvt.s32.f32 %v175
  %v208 = vcvt.s32.f32 %v176
  %v209 = vcvt.s32.f32 %v177
  %v210 = vcvt.s32.f32 %v178
  %v211 = vcvt.s32.f32 %v179
  %v212 = vcvt.s32.f32 %v180
  %v213 = vcvt.s32.f32 %v181
  %v214 = vcvt.s32.f32 %v182
  %v215 = vcvt.s32.f32 %v183
  %v216 = vcvt.s32.f32 %v184
  %v217 = vcvt.s32.f32 %v185
  %v218 = vcvt.s32.f32 %v186
  %v219 = vcvt.s32.f32 %v187
  %v220 = vcvt.s32.f32 %v188
  %v221 = vcvt.s32.f32 %v189
  %v222 = vcvt.s32.f32 %v190
  %v223 = vcvt.s32.f32 %v191
  %v224 = vcvt.s32.f32 %v192
  %v225 = vcvt.s32.f32 %v193
  %v226 = vcvt.s32.f32 %v194
  %v227 = vcvt.s32.f32 %v195
  %v228 = vcvt.s32.f32 %v196
  %v229 = vcvt.s32.f32 %v197
  %v230 = vcvt.s32.f32 %v198
  %v231 = vcvt.s32.f32 %v199
  %v232 = vcvt.s32.f32 %v200
  %v233 = vcvt.s32.f32 %v201
  %v234 = vcvt.s32.f32 %v202
  %v235 = vcvt.s32.f32 %v203
  %v236 = vcvt.s32.f32 %v204
  %237 = vset.pattern.permute.xlu0 1
  %238 = vperm.xlu0 %237, %v11
  %v239 = vpop.permute.xlu0 %238
  %240 = vset.pattern.permute.xlu0 1
  %241 = vperm.xlu0 %240, %v12
  %v242 = vpop.permute.xlu0 %241
  %243 = vset.pattern.permute.xlu0 1
  %244 = vperm.xlu0 %243, %v13
  %v245 = vpop.permute.xlu0 %244
  %246 = vset.pattern.permute.xlu0 1
  %247 = vperm.xlu0 %246, %v14
  %v248 = vpop.permute.xlu0 %247
  %249 = vset.pattern.permute.xlu0 1
  %250 = vperm.xlu0 %249, %v15
  %v251 = vpop.permute.xlu0 %250
  %252 = vset.pattern.permute.xlu0 1
  %253 = vperm.xlu0 %252, %v16
  %v254 = vpop.permute.xlu0 %253
  %255 = vset.pattern.permute.xlu0 1
  %256 = vperm.xlu0 %255, %v17
  %v257 = vpop.permute.xlu0 %256
  %258 = vset.pattern.permute.xlu0 1
  %259 = vperm.xlu0 %258, %v18
  %v260 = vpop.permute.xlu0 %259
  %261 = vset.pattern.permute.xlu0 1
  %262 = vperm.xlu0 %261, %v19
  %v263 = vpop.permute.xlu0 %262
  %264 = vset.pattern.permute.xlu0 1
  %265 = vperm.xlu0 %264, %v20
  %v266 = vpop.permute.xlu0 %265
  %267 = vset.pattern.permute.xlu0 1
  %268 = vperm.xlu0 %267, %v21
  %v269 = vpop.permute.xlu0 %268
  %270 = vset.pattern.permute.xlu0 1
  %271 = vperm.xlu0 %270, %v22
  %v272 = vpop.permute.xlu0 %271
  %273 = vset.pattern.permute.xlu0 1
  %274 = vperm.xlu0 %273, %v23
  %v275 = vpop.permute.xlu0 %274
  %276 = vset.pattern.permute.xlu0 1
  %277 = vperm.xlu0 %276, %v24
  %v278 = vpop.permute.xlu0 %277
  %279 = vset.pattern.permute.xlu0 1
  %280 = vperm.xlu0 %279, %v25
  %v281 = vpop.permute.xlu0 %280
  %282 = vset.pattern.permute.xlu0 1
  %283 = vperm.xlu0 %282, %v26
  %v284 = vpop.permute.xlu0 %283
  %285 = vset.pattern.permute.xlu0 1
  %286 = vperm.xlu0 %285, %v27
  %v287 = vpop.permute.xlu0 %286
  %288 = vset.pattern.permute.xlu0 1
  %289 = vperm.xlu0 %288, %v28
  %v290 = vpop.permute.xlu0 %289
  %291 = vset.pattern.permute.xlu0 1
  %292 = vperm.xlu0 %291, %v29
  %v293 = vpop.permute.xlu0 %292
  %294 = vset.pattern.permute.xlu0 1
  %295 = vperm.xlu0 %294, %v30
  %v296 = vpop.permute.xlu0 %295
  %297 = vset.pattern.permute.xlu0 1
  %298 = vperm.xlu0 %297, %v31
  %v299 = vpop.permute.xlu0 %298
  %300 = vset.pattern.permute.xlu0 1
  %301 = vperm.xlu0 %300, %v32
  %v302 = vpop.permute.xlu0 %301
  %303 = vset.pattern.permute.xlu0 1
  %304 = vperm.xlu0 %303, %v33
  %v305 = vpop.permute.xlu0 %304
  %306 = vset.pattern.permute.xlu0 1
  %307 = vperm.xlu0 %306, %v34
  %v308 = vpop.permute.xlu0 %307
  %309 = vset.pattern.permute.xlu0 1
  %310 = vperm.xlu0 %309, %v35
  %v311 = vpop.permute.xlu0 %310
  %312 = vset.pattern.permute.xlu0 1
  %313 = vperm.xlu0 %312, %v36
  %v314 = vpop.permute.xlu0 %313
  %315 = vset.pattern.permute.xlu0 1
  %316 = vperm.xlu0 %315, %v37
  %v317 = vpop.permute.xlu0 %316
  %318 = vset.pattern.permute.xlu0 1
  %319 = vperm.xlu0 %318, %v38
  %v320 = vpop.permute.xlu0 %319
  %321 = vset.pattern.permute.xlu0 1
  %322 = vperm.xlu0 %321, %v39
  %v323 = vpop.permute.xlu0 %322
  %324 = vset.pattern.permute.xlu0 1
  %325 = vperm.xlu0 %324, %v40
  %v326 = vpop.permute.xlu0 %325
  %327 = vset.pattern.permute.xlu0 1
  %328 = vperm.xlu0 %327, %v41
  %v329 = vpop.permute.xlu0 %328
  %330 = vset.pattern.permute.xlu0 1
  %331 = vperm.xlu0 %330, %v42
  %v332 = vpop.permute.xlu0 %331
  %vm333 = vcmp.eq.s32.totalorder %v44, %v239
  %vm334 = vcmp.eq.s32.totalorder %v44, %v242
  %vm335 = vcmp.eq.s32.totalorder %v44, %v245
  %vm336 = vcmp.eq.s32.totalorder %v44, %v248
  %vm337 = vcmp.eq.s32.totalorder %v44, %v251
  %vm338 = vcmp.eq.s32.totalorder %v44, %v254
  %vm339 = vcmp.eq.s32.totalorder %v44, %v257
  %vm340 = vcmp.eq.s32.totalorder %v44, %v260
  %vm341 = vcmp.eq.s32.totalorder %v44, %v263
  %vm342 = vcmp.eq.s32.totalorder %v44, %v266
  %vm343 = vcmp.eq.s32.totalorder %v44, %v269
  %vm344 = vcmp.eq.s32.totalorder %v44, %v272
  %vm345 = vcmp.eq.s32.totalorder %v44, %v275
  %vm346 = vcmp.eq.s32.totalorder %v44, %v278
  %vm347 = vcmp.eq.s32.totalorder %v44, %v281
  %vm348 = vcmp.eq.s32.totalorder %v44, %v284
  %vm349 = vcmp.eq.s32.totalorder %v44, %v287
  %vm350 = vcmp.eq.s32.totalorder %v44, %v290
  %vm351 = vcmp.eq.s32.totalorder %v44, %v293
  %vm352 = vcmp.eq.s32.totalorder %v44, %v296
  %vm353 = vcmp.eq.s32.totalorder %v44, %v299
  %vm354 = vcmp.eq.s32.totalorder %v44, %v302
  %vm355 = vcmp.eq.s32.totalorder %v44, %v305
  %vm356 = vcmp.eq.s32.totalorder %v44, %v308
  %vm357 = vcmp.eq.s32.totalorder %v44, %v311
  %vm358 = vcmp.eq.s32.totalorder %v44, %v314
  %vm359 = vcmp.eq.s32.totalorder %v44, %v317
  %vm360 = vcmp.eq.s32.totalorder %v44, %v320
  %vm361 = vcmp.eq.s32.totalorder %v44, %v323
  %vm362 = vcmp.eq.s32.totalorder %v44, %v326
  %vm363 = vcmp.eq.s32.totalorder %v44, %v329
  %vm364 = vcmp.eq.s32.totalorder %v44, %v332
  %v365 = vadd.s32 %v11, 5
  %v366 = vadd.s32 %v12, 5
  %v367 = vadd.s32 %v13, 5
  %v368 = vadd.s32 %v14, 5
  %v369 = vadd.s32 %v15, 5
  %v370 = vadd.s32 %v16, 5
  %v371 = vadd.s32 %v17, 5
  %v372 = vadd.s32 %v18, 5
  %v373 = vadd.s32 %v19, 5
  %v374 = vadd.s32 %v20, 5
  %v375 = vadd.s32 %v21, 5
  %v376 = vadd.s32 %v22, 5
  %v377 = vadd.s32 %v23, 5
  %v378 = vadd.s32 %v24, 5
  %v379 = vadd.s32 %v25, 5
  %v380 = vadd.s32 %v26, 5
  %v381 = vadd.s32 %v27, 5
  %v382 = vadd.s32 %v28, 5
  %v383 = vadd.s32 %v29, 5
  %v384 = vadd.s32 %v30, 5
  %v385 = vadd.s32 %v31, 5
  %v386 = vadd.s32 %v32, 5
  %v387 = vadd.s32 %v33, 5
  %v388 = vadd.s32 %v34, 5
  %v389 = vadd.s32 %v35, 5
  %v390 = vadd.s32 %v36, 5
  %v391 = vadd.s32 %v37, 5
  %v392 = vadd.s32 %v38, 5
  %v393 = vadd.s32 %v39, 5
  %v394 = vadd.s32 %v40, 5
  %v395 = vadd.s32 %v41, 5
  %v396 = vadd.s32 %v42, 5
  %397 = vset.pattern.permute.xlu0 2
  %398 = vperm.xlu0 %397, %v365
  %v399 = vpop.permute.xlu0 %398
  %400 = vset.pattern.permute.xlu0 2
  %401 = vperm.xlu0 %400, %v366
  %v402 = vpop.permute.xlu0 %401
  %403 = vset.pattern.permute.xlu0 2
  %404 = vperm.xlu0 %403, %v367
  %v405 = vpop.permute.xlu0 %404
  %406 = vset.pattern.permute.xlu0 2
  %407 = vperm.xlu0 %406, %v368
  %v408 = vpop.permute.xlu0 %407
  %409 = vset.pattern.permute.xlu0 2
  %410 = vperm.xlu0 %409, %v369
  %v411 = vpop.permute.xlu0 %410
  %412 = vset.pattern.permute.xlu0 2
  %413 = vperm.xlu0 %412, %v370
  %v414 = vpop.permute.xlu0 %413
  %415 = vset.pattern.permute.xlu0 2
  %416 = vperm.xlu0 %415, %v371
  %v417 = vpop.permute.xlu0 %416
  %418 = vset.pattern.permute.xlu0 2
  %419 = vperm.xlu0 %418, %v372
  %v420 = vpop.permute.xlu0 %419
  %421 = vset.pattern.permute.xlu0 2
  %422 = vperm.xlu0 %421, %v373
  %v423 = vpop.permute.xlu0 %422
  %424 = vset.pattern.permute.xlu0 2
  %425 = vperm.xlu0 %424, %v374
  %v426 = vpop.permute.xlu0 %425
  %427 = vset.pattern.permute.xlu0 2
  %428 = vperm.xlu0 %427, %v375
  %v429 = vpop.permute.xlu0 %428
  %430 = vset.pattern.permute.xlu0 2
  %431 = vperm.xlu0 %430, %v376
  %v432 = vpop.permute.xlu0 %431
  %433 = vset.pattern.permute.xlu0 2
  %434 = vperm.xlu0 %433, %v377
  %v435 = vpop.permute.xlu0 %434
  %436 = vset.pattern.permute.xlu0 2
  %437 = vperm.xlu0 %436, %v378
  %v438 = vpop.permute.xlu0 %437
  %439 = vset.pattern.permute.xlu0 2
  %440 = vperm.xlu0 %439, %v379
  %v441 = vpop.permute.xlu0 %440
  %442 = vset.pattern.permute.xlu0 2
  %443 = vperm.xlu0 %442, %v380
  %v444 = vpop.permute.xlu0 %443
  %445 = vset.pattern.permute.xlu0 2
  %446 = vperm.xlu0 %445, %v381
  %v447 = vpop.permute.xlu0 %446
  %448 = vset.pattern.permute.xlu0 2
  %449 = vperm.xlu0 %448, %v382
  %v450 = vpop.permute.xlu0 %449
  %451 = vset.pattern.permute.xlu0 2
  %452 = vperm.xlu0 %451, %v383
  %v453 = vpop.permute.xlu0 %452
  %454 = vset.pattern.permute.xlu0 2
  %455 = vperm.xlu0 %454, %v384
  %v456 = vpop.permute.xlu0 %455
  %457 = vset.pattern.permute.xlu0 2
  %458 = vperm.xlu0 %457, %v385
  %v459 = vpop.permute.xlu0 %458
  %460 = vset.pattern.permute.xlu0 2
  %461 = vperm.xlu0 %460, %v386
  %v462 = vpop.permute.xlu0 %461
  %463 = vset.pattern.permute.xlu0 2
  %464 = vperm.xlu0 %463, %v387
  %v465 = vpop.permute.xlu0 %464
  %466 = vset.pattern.permute.xlu0 2
  %467 = vperm.xlu0 %466, %v388
  %v468 = vpop.permute.xlu0 %467
  %469 = vset.pattern.permute.xlu0 2
  %470 = vperm.xlu0 %469, %v389
  %v471 = vpop.permute.xlu0 %470
  %472 = vset.pattern.permute.xlu0 2
  %473 = vperm.xlu0 %472, %v390
  %v474 = vpop.permute.xlu0 %473
  %475 = vset.pattern.permute.xlu0 2
  %476 = vperm.xlu0 %475, %v391
  %v477 = vpop.permute.xlu0 %476
  %478 = vset.pattern.permute.xlu0 2
  %479 = vperm.xlu0 %478, %v392
  %v480 = vpop.permute.xlu0 %479
  %481 = vset.pattern.permute.xlu0 2
  %482 = vperm.xlu0 %481, %v393
  %v483 = vpop.permute.xlu0 %482
  %484 = vset.pattern.permute.xlu0 2
  %485 = vperm.xlu0 %484, %v394
  %v486 = vpop.permute.xlu0 %485
  %487 = vset.pattern.permute.xlu0 2
  %488 = vperm.xlu0 %487, %v395
  %v489 = vpop.permute.xlu0 %488
  %490 = vset.pattern.permute.xlu0 2
  %491 = vperm.xlu0 %490, %v396
  %v492 = vpop.permute.xlu0 %491
  %vm493 = vcmp.eq.s32.totalorder %v44, %v399
  %vm494 = vcmp.eq.s32.totalorder %v44, %v402
  %vm495 = vcmp.eq.s32.totalorder %v44, %v405
  %vm496 = vcmp.eq.s32.totalorder %v44, %v408
  %vm497 = vcmp.eq.s32.totalorder %v44, %v411
  %vm498 = vcmp.eq.s32.totalorder %v44, %v414
  %vm499 = vcmp.eq.s32.totalorder %v44, %v417
  %vm500 = vcmp.eq.s32.totalorder %v44, %v420
  %vm501 = vcmp.eq.s32.totalorder %v44, %v423
  %vm502 = vcmp.eq.s32.totalorder %v44, %v426
  %vm503 = vcmp.eq.s32.totalorder %v44, %v429
  %vm504 = vcmp.eq.s32.totalorder %v44, %v432
  %vm505 = vcmp.eq.s32.totalorder %v44, %v435
  %vm506 = vcmp.eq.s32.totalorder %v44, %v438
  %vm507 = vcmp.eq.s32.totalorder %v44, %v441
  %vm508 = vcmp.eq.s32.totalorder %v44, %v444
  %vm509 = vcmp.eq.s32.totalorder %v44, %v447
  %vm510 = vcmp.eq.s32.totalorder %v44, %v450
  %vm511 = vcmp.eq.s32.totalorder %v44, %v453
  %vm512 = vcmp.eq.s32.totalorder %v44, %v456
  %vm513 = vcmp.eq.s32.totalorder %v44, %v459
  %vm514 = vcmp.eq.s32.totalorder %v44, %v462
  %vm515 = vcmp.eq.s32.totalorder %v44, %v465
  %vm516 = vcmp.eq.s32.totalorder %v44, %v468
  %vm517 = vcmp.eq.s32.totalorder %v44, %v471
  %vm518 = vcmp.eq.s32.totalorder %v44, %v474
  %vm519 = vcmp.eq.s32.totalorder %v44, %v477
  %vm520 = vcmp.eq.s32.totalorder %v44, %v480
  %vm521 = vcmp.eq.s32.totalorder %v44, %v483
  %vm522 = vcmp.eq.s32.totalorder %v44, %v486
  %vm523 = vcmp.eq.s32.totalorder %v44, %v489
  %vm524 = vcmp.eq.s32.totalorder %v44, %v492
  %vm525 = vmor %vm333, %vm493
  %vm526 = vmor %vm334, %vm494
  %vm527 = vmor %vm335, %vm495
  %vm528 = vmor %vm336, %vm496
  %vm529 = vmor %vm337, %vm497
  %vm530 = vmor %vm338, %vm498
  %vm531 = vmor %vm339, %vm499
  %vm532 = vmor %vm340, %vm500
  %vm533 = vmor %vm341, %vm501
  %vm534 = vmor %vm342, %vm502
  %vm535 = vmor %vm343, %vm503
  %vm536 = vmor %vm344, %vm504
  %vm537 = vmor %vm345, %vm505
  %vm538 = vmor %vm346, %vm506
  %vm539 = vmor %vm347, %vm507
  %vm540 = vmor %vm348, %vm508
  %vm541 = vmor %vm349, %vm509
  %vm542 = vmor %vm350, %vm510
  %vm543 = vmor %vm351, %vm511
  %vm544 = vmor %vm352, %vm512
  %vm545 = vmor %vm353, %vm513
  %vm546 = vmor %vm354, %vm514
  %vm547 = vmor %vm355, %vm515
  %vm548 = vmor %vm356, %vm516
  %vm549 = vmor %vm357, %vm517
  %vm550 = vmor %vm358, %vm518
  %vm551 = vmor %vm359, %vm519
  %vm552 = vmor %vm360, %vm520
  %vm553 = vmor %vm361, %vm521
  %vm554 = vmor %vm362, %vm522
  %vm555 = vmor %vm363, %vm523
  %vm556 = vmor %vm364, %vm524
  %v557 = vadd.s32 %v11, 17
  %v558 = vadd.s32 %v12, 17
  %v559 = vadd.s32 %v13, 17
  %v560 = vadd.s32 %v14, 17
  %v561 = vadd.s32 %v15, 17
  %v562 = vadd.s32 %v16, 17
  %v563 = vadd.s32 %v17, 17
  %v564 = vadd.s32 %v18, 17
  %v565 = vadd.s32 %v19, 17
  %v566 = vadd.s32 %v20, 17
  %v567 = vadd.s32 %v21, 17
  %v568 = vadd.s32 %v22, 17
  %v569 = vadd.s32 %v23, 17
  %v570 = vadd.s32 %v24, 17
  %v571 = vadd.s32 %v25, 17
  %v572 = vadd.s32 %v26, 17
  %v573 = vadd.s32 %v27, 17
  %v574 = vadd.s32 %v28, 17
  %v575 = vadd.s32 %v29, 17
  %v576 = vadd.s32 %v30, 17
  %v577 = vadd.s32 %v31, 17
  %v578 = vadd.s32 %v32, 17
  %v579 = vadd.s32 %v33, 17
  %v580 = vadd.s32 %v34, 17
  %v581 = vadd.s32 %v35, 17
  %v582 = vadd.s32 %v36, 17
  %v583 = vadd.s32 %v37, 17
  %v584 = vadd.s32 %v38, 17
  %v585 = vadd.s32 %v39, 17
  %v586 = vadd.s32 %v40, 17
  %v587 = vadd.s32 %v41, 17
  %v588 = vadd.s32 %v42, 17
  %589 = vset.pattern.permute.xlu0 3
  %590 = vperm.xlu0 %589, %v557
  %v591 = vpop.permute.xlu0 %590
  %592 = vset.pattern.permute.xlu0 3
  %593 = vperm.xlu0 %592, %v558
  %v594 = vpop.permute.xlu0 %593
  %595 = vset.pattern.permute.xlu0 3
  %596 = vperm.xlu0 %595, %v559
  %v597 = vpop.permute.xlu0 %596
  %598 = vset.pattern.permute.xlu0 3
  %599 = vperm.xlu0 %598, %v560
  %v600 = vpop.permute.xlu0 %599
  %601 = vset.pattern.permute.xlu0 3
  %602 = vperm.xlu0 %601, %v561
  %v603 = vpop.permute.xlu0 %602
  %604 = vset.pattern.permute.xlu0 3
  %605 = vperm.xlu0 %604, %v562
  %v606 = vpop.permute.xlu0 %605
  %607 = vset.pattern.permute.xlu0 3
  %608 = vperm.xlu0 %607, %v563
  %v609 = vpop.permute.xlu0 %608
  %610 = vset.pattern.permute.xlu0 3
  %611 = vperm.xlu0 %610, %v564
  %v612 = vpop.permute.xlu0 %611
  %613 = vset.pattern.permute.xlu0 3
  %614 = vperm.xlu0 %613, %v565
  %v615 = vpop.permute.xlu0 %614
  %616 = vset.pattern.permute.xlu0 3
  %617 = vperm.xlu0 %616, %v566
  %v618 = vpop.permute.xlu0 %617
  %619 = vset.pattern.permute.xlu0 3
  %620 = vperm.xlu0 %619, %v567
  %v621 = vpop.permute.xlu0 %620
  %622 = vset.pattern.permute.xlu0 3
  %623 = vperm.xlu0 %622, %v568
  %v624 = vpop.permute.xlu0 %623
  %625 = vset.pattern.permute.xlu0 3
  %626 = vperm.xlu0 %625, %v569
  %v627 = vpop.permute.xlu0 %626
  %628 = vset.pattern.permute.xlu0 3
  %629 = vperm.xlu0 %628, %v570
  %v630 = vpop.permute.xlu0 %629
  %631 = vset.pattern.permute.xlu0 3
  %632 = vperm.xlu0 %631, %v571
  %v633 = vpop.permute.xlu0 %632
  %634 = vset.pattern.permute.xlu0 3
  %635 = vperm.xlu0 %634, %v572
  %v636 = vpop.permute.xlu0 %635
  %637 = vset.pattern.permute.xlu0 3
  %638 = vperm.xlu0 %637, %v573
  %v639 = vpop.permute.xlu0 %638
  %640 = vset.pattern.permute.xlu0 3
  %641 = vperm.xlu0 %640, %v574
  %v642 = vpop.permute.xlu0 %641
  %643 = vset.pattern.permute.xlu0 3
  %644 = vperm.xlu0 %643, %v575
  %v645 = vpop.permute.xlu0 %644
  %646 = vset.pattern.permute.xlu0 3
  %647 = vperm.xlu0 %646, %v576
  %v648 = vpop.permute.xlu0 %647
  %649 = vset.pattern.permute.xlu0 3
  %650 = vperm.xlu0 %649, %v577
  %v651 = vpop.permute.xlu0 %650
  %652 = vset.pattern.permute.xlu0 3
  %653 = vperm.xlu0 %652, %v578
  %v654 = vpop.permute.xlu0 %653
  %655 = vset.pattern.permute.xlu0 3
  %656 = vperm.xlu0 %655, %v579
  %v657 = vpop.permute.xlu0 %656
  %658 = vset.pattern.permute.xlu0 3
  %659 = vperm.xlu0 %658, %v580
  %v660 = vpop.permute.xlu0 %659
  %661 = vset.pattern.permute.xlu0 3
  %662 = vperm.xlu0 %661, %v581
  %v663 = vpop.permute.xlu0 %662
  %664 = vset.pattern.permute.xlu0 3
  %665 = vperm.xlu0 %664, %v582
  %v666 = vpop.permute.xlu0 %665
  %667 = vset.pattern.permute.xlu0 3
  %668 = vperm.xlu0 %667, %v583
  %v669 = vpop.permute.xlu0 %668
  %670 = vset.pattern.permute.xlu0 3
  %671 = vperm.xlu0 %670, %v584
  %v672 = vpop.permute.xlu0 %671
  %673 = vset.pattern.permute.xlu0 3
  %674 = vperm.xlu0 %673, %v585
  %v675 = vpop.permute.xlu0 %674
  %676 = vset.pattern.permute.xlu0 3
  %677 = vperm.xlu0 %676, %v586
  %v678 = vpop.permute.xlu0 %677
  %679 = vset.pattern.permute.xlu0 3
  %680 = vperm.xlu0 %679, %v587
  %v681 = vpop.permute.xlu0 %680
  %682 = vset.pattern.permute.xlu0 3
  %683 = vperm.xlu0 %682, %v588
  %v684 = vpop.permute.xlu0 %683
  %vm685 = vcmp.eq.s32.totalorder %v44, %v591
  %vm686 = vcmp.eq.s32.totalorder %v44, %v594
  %vm687 = vcmp.eq.s32.totalorder %v44, %v597
  %vm688 = vcmp.eq.s32.totalorder %v44, %v600
  %vm689 = vcmp.eq.s32.totalorder %v44, %v603
  %vm690 = vcmp.eq.s32.totalorder %v44, %v606
  %vm691 = vcmp.eq.s32.totalorder %v44, %v609
  %vm692 = vcmp.eq.s32.totalorder %v44, %v612
  %vm693 = vcmp.eq.s32.totalorder %v44, %v615
  %vm694 = vcmp.eq.s32.totalorder %v44, %v618
  %vm695 = vcmp.eq.s32.totalorder %v44, %v621
  %vm696 = vcmp.eq.s32.totalorder %v44, %v624
  %vm697 = vcmp.eq.s32.totalorder %v44, %v627
  %vm698 = vcmp.eq.s32.totalorder %v44, %v630
  %vm699 = vcmp.eq.s32.totalorder %v44, %v633
  %vm700 = vcmp.eq.s32.totalorder %v44, %v636
  %vm701 = vcmp.eq.s32.totalorder %v44, %v639
  %vm702 = vcmp.eq.s32.totalorder %v44, %v642
  %vm703 = vcmp.eq.s32.totalorder %v44, %v645
  %vm704 = vcmp.eq.s32.totalorder %v44, %v648
  %vm705 = vcmp.eq.s32.totalorder %v44, %v651
  %vm706 = vcmp.eq.s32.totalorder %v44, %v654
  %vm707 = vcmp.eq.s32.totalorder %v44, %v657
  %vm708 = vcmp.eq.s32.totalorder %v44, %v660
  %vm709 = vcmp.eq.s32.totalorder %v44, %v663
  %vm710 = vcmp.eq.s32.totalorder %v44, %v666
  %vm711 = vcmp.eq.s32.totalorder %v44, %v669
  %vm712 = vcmp.eq.s32.totalorder %v44, %v672
  %vm713 = vcmp.eq.s32.totalorder %v44, %v675
  %vm714 = vcmp.eq.s32.totalorder %v44, %v678
  %vm715 = vcmp.eq.s32.totalorder %v44, %v681
  %vm716 = vcmp.eq.s32.totalorder %v44, %v684
  %vm717 = vmor %vm525, %vm685
  %vm718 = vmor %vm526, %vm686
  %vm719 = vmor %vm527, %vm687
  %vm720 = vmor %vm528, %vm688
  %vm721 = vmor %vm529, %vm689
  %vm722 = vmor %vm530, %vm690
  %vm723 = vmor %vm531, %vm691
  %vm724 = vmor %vm532, %vm692
  %vm725 = vmor %vm533, %vm693
  %vm726 = vmor %vm534, %vm694
  %vm727 = vmor %vm535, %vm695
  %vm728 = vmor %vm536, %vm696
  %vm729 = vmor %vm537, %vm697
  %vm730 = vmor %vm538, %vm698
  %vm731 = vmor %vm539, %vm699
  %vm732 = vmor %vm540, %vm700
  %vm733 = vmor %vm541, %vm701
  %vm734 = vmor %vm542, %vm702
  %vm735 = vmor %vm543, %vm703
  %vm736 = vmor %vm544, %vm704
  %vm737 = vmor %vm545, %vm705
  %vm738 = vmor %vm546, %vm706
  %vm739 = vmor %vm547, %vm707
  %vm740 = vmor %vm548, %vm708
  %vm741 = vmor %vm549, %vm709
  %vm742 = vmor %vm550, %vm710
  %vm743 = vmor %vm551, %vm711
  %vm744 = vmor %vm552, %vm712
  %vm745 = vmor %vm553, %vm713
  %vm746 = vmor %vm554, %vm714
  %vm747 = vmor %vm555, %vm715
  %vm748 = vmor %vm556, %vm716
  %v749 = vadd.s32 %v11, 29
  %v750 = vadd.s32 %v12, 29
  %v751 = vadd.s32 %v13, 29
  %v752 = vadd.s32 %v14, 29
  %v753 = vadd.s32 %v15, 29
  %v754 = vadd.s32 %v16, 29
  %v755 = vadd.s32 %v17, 29
  %v756 = vadd.s32 %v18, 29
  %v757 = vadd.s32 %v19, 29
  %v758 = vadd.s32 %v20, 29
  %v759 = vadd.s32 %v21, 29
  %v760 = vadd.s32 %v22, 29
  %v761 = vadd.s32 %v23, 29
  %v762 = vadd.s32 %v24, 29
  %v763 = vadd.s32 %v25, 29
  %v764 = vadd.s32 %v26, 29
  %v765 = vadd.s32 %v27, 29
  %v766 = vadd.s32 %v28, 29
  %v767 = vadd.s32 %v29, 29
  %v768 = vadd.s32 %v30, 29
  %v769 = vadd.s32 %v31, 29
  %v770 = vadd.s32 %v32, 29
  %v771 = vadd.s32 %v33, 29
  %v772 = vadd.s32 %v34, 29
  %v773 = vadd.s32 %v35, 29
  %v774 = vadd.s32 %v36, 29
  %v775 = vadd.s32 %v37, 29
  %v776 = vadd.s32 %v38, 29
  %v777 = vadd.s32 %v39, 29
  %v778 = vadd.s32 %v40, 29
  %v779 = vadd.s32 %v41, 29
  %v780 = vadd.s32 %v42, 29
  %781 = vset.pattern.permute.xlu0 4
  %782 = vperm.xlu0 %781, %v749
  %v783 = vpop.permute.xlu0 %782
  %784 = vset.pattern.permute.xlu0 4
  %785 = vperm.xlu0 %784, %v750
  %v786 = vpop.permute.xlu0 %785
  %787 = vset.pattern.permute.xlu0 4
  %788 = vperm.xlu0 %787, %v751
  %v789 = vpop.permute.xlu0 %788
  %790 = vset.pattern.permute.xlu0 4
  %791 = vperm.xlu0 %790, %v752
  %v792 = vpop.permute.xlu0 %791
  %793 = vset.pattern.permute.xlu0 4
  %794 = vperm.xlu0 %793, %v753
  %v795 = vpop.permute.xlu0 %794
  %796 = vset.pattern.permute.xlu0 4
  %797 = vperm.xlu0 %796, %v754
  %v798 = vpop.permute.xlu0 %797
  %799 = vset.pattern.permute.xlu0 4
  %800 = vperm.xlu0 %799, %v755
  %v801 = vpop.permute.xlu0 %800
  %802 = vset.pattern.permute.xlu0 4
  %803 = vperm.xlu0 %802, %v756
  %v804 = vpop.permute.xlu0 %803
  %805 = vset.pattern.permute.xlu0 4
  %806 = vperm.xlu0 %805, %v757
  %v807 = vpop.permute.xlu0 %806
  %808 = vset.pattern.permute.xlu0 4
  %809 = vperm.xlu0 %808, %v758
  %v810 = vpop.permute.xlu0 %809
  %811 = vset.pattern.permute.xlu0 4
  %812 = vperm.xlu0 %811, %v759
  %v813 = vpop.permute.xlu0 %812
  %814 = vset.pattern.permute.xlu0 4
  %815 = vperm.xlu0 %814, %v760
  %v816 = vpop.permute.xlu0 %815
  %817 = vset.pattern.permute.xlu0 4
  %818 = vperm.xlu0 %817, %v761
  %v819 = vpop.permute.xlu0 %818
  %820 = vset.pattern.permute.xlu0 4
  %821 = vperm.xlu0 %820, %v762
  %v822 = vpop.permute.xlu0 %821
  %823 = vset.pattern.permute.xlu0 4
  %824 = vperm.xlu0 %823, %v763
  %v825 = vpop.permute.xlu0 %824
  %826 = vset.pattern.permute.xlu0 4
  %827 = vperm.xlu0 %826, %v764
  %v828 = vpop.permute.xlu0 %827
  %829 = vset.pattern.permute.xlu0 4
  %830 = vperm.xlu0 %829, %v765
  %v831 = vpop.permute.xlu0 %830
  %832 = vset.pattern.permute.xlu0 4
  %833 = vperm.xlu0 %832, %v766
  %v834 = vpop.permute.xlu0 %833
  %835 = vset.pattern.permute.xlu0 4
  %836 = vperm.xlu0 %835, %v767
  %v837 = vpop.permute.xlu0 %836
  %838 = vset.pattern.permute.xlu0 4
  %839 = vperm.xlu0 %838, %v768
  %v840 = vpop.permute.xlu0 %839
  %841 = vset.pattern.permute.xlu0 4
  %842 = vperm.xlu0 %841, %v769
  %v843 = vpop.permute.xlu0 %842
  %844 = vset.pattern.permute.xlu0 4
  %845 = vperm.xlu0 %844, %v770
  %v846 = vpop.permute.xlu0 %845
  %847 = vset.pattern.permute.xlu0 4
  %848 = vperm.xlu0 %847, %v771
  %v849 = vpop.permute.xlu0 %848
  %850 = vset.pattern.permute.xlu0 4
  %851 = vperm.xlu0 %850, %v772
  %v852 = vpop.permute.xlu0 %851
  %853 = vset.pattern.permute.xlu0 4
  %854 = vperm.xlu0 %853, %v773
  %v855 = vpop.permute.xlu0 %854
  %856 = vset.pattern.permute.xlu0 4
  %857 = vperm.xlu0 %856, %v774
  %v858 = vpop.permute.xlu0 %857
  %859 = vset.pattern.permute.xlu0 4
  %860 = vperm.xlu0 %859, %v775
  %v861 = vpop.permute.xlu0 %860
  %862 = vset.pattern.permute.xlu0 4
  %863 = vperm.xlu0 %862, %v776
  %v864 = vpop.permute.xlu0 %863
  %865 = vset.pattern.permute.xlu0 4
  %866 = vperm.xlu0 %865, %v777
  %v867 = vpop.permute.xlu0 %866
  %868 = vset.pattern.permute.xlu0 4
  %869 = vperm.xlu0 %868, %v778
  %v870 = vpop.permute.xlu0 %869
  %871 = vset.pattern.permute.xlu0 4
  %872 = vperm.xlu0 %871, %v779
  %v873 = vpop.permute.xlu0 %872
  %874 = vset.pattern.permute.xlu0 4
  %875 = vperm.xlu0 %874, %v780
  %v876 = vpop.permute.xlu0 %875
  %vm877 = vcmp.eq.s32.totalorder %v44, %v783
  %vm878 = vcmp.eq.s32.totalorder %v44, %v786
  %vm879 = vcmp.eq.s32.totalorder %v44, %v789
  %vm880 = vcmp.eq.s32.totalorder %v44, %v792
  %vm881 = vcmp.eq.s32.totalorder %v44, %v795
  %vm882 = vcmp.eq.s32.totalorder %v44, %v798
  %vm883 = vcmp.eq.s32.totalorder %v44, %v801
  %vm884 = vcmp.eq.s32.totalorder %v44, %v804
  %vm885 = vcmp.eq.s32.totalorder %v44, %v807
  %vm886 = vcmp.eq.s32.totalorder %v44, %v810
  %vm887 = vcmp.eq.s32.totalorder %v44, %v813
  %vm888 = vcmp.eq.s32.totalorder %v44, %v816
  %vm889 = vcmp.eq.s32.totalorder %v44, %v819
  %vm890 = vcmp.eq.s32.totalorder %v44, %v822
  %vm891 = vcmp.eq.s32.totalorder %v44, %v825
  %vm892 = vcmp.eq.s32.totalorder %v44, %v828
  %vm893 = vcmp.eq.s32.totalorder %v44, %v831
  %vm894 = vcmp.eq.s32.totalorder %v44, %v834
  %vm895 = vcmp.eq.s32.totalorder %v44, %v837
  %vm896 = vcmp.eq.s32.totalorder %v44, %v840
  %vm897 = vcmp.eq.s32.totalorder %v44, %v843
  %vm898 = vcmp.eq.s32.totalorder %v44, %v846
  %vm899 = vcmp.eq.s32.totalorder %v44, %v849
  %vm900 = vcmp.eq.s32.totalorder %v44, %v852
  %vm901 = vcmp.eq.s32.totalorder %v44, %v855
  %vm902 = vcmp.eq.s32.totalorder %v44, %v858
  %vm903 = vcmp.eq.s32.totalorder %v44, %v861
  %vm904 = vcmp.eq.s32.totalorder %v44, %v864
  %vm905 = vcmp.eq.s32.totalorder %v44, %v867
  %vm906 = vcmp.eq.s32.totalorder %v44, %v870
  %vm907 = vcmp.eq.s32.totalorder %v44, %v873
  %vm908 = vcmp.eq.s32.totalorder %v44, %v876
  %vm909 = vmor %vm717, %vm877
  %vm910 = vmor %vm718, %vm878
  %vm911 = vmor %vm719, %vm879
  %vm912 = vmor %vm720, %vm880
  %vm913 = vmor %vm721, %vm881
  %vm914 = vmor %vm722, %vm882
  %vm915 = vmor %vm723, %vm883
  %vm916 = vmor %vm724, %vm884
  %vm917 = vmor %vm725, %vm885
  %vm918 = vmor %vm726, %vm886
  %vm919 = vmor %vm727, %vm887
  %vm920 = vmor %vm728, %vm888
  %vm921 = vmor %vm729, %vm889
  %vm922 = vmor %vm730, %vm890
  %vm923 = vmor %vm731, %vm891
  %vm924 = vmor %vm732, %vm892
  %vm925 = vmor %vm733, %vm893
  %vm926 = vmor %vm734, %vm894
  %vm927 = vmor %vm735, %vm895
  %vm928 = vmor %vm736, %vm896
  %vm929 = vmor %vm737, %vm897
  %vm930 = vmor %vm738, %vm898
  %vm931 = vmor %vm739, %vm899
  %vm932 = vmor %vm740, %vm900
  %vm933 = vmor %vm741, %vm901
  %vm934 = vmor %vm742, %vm902
  %vm935 = vmor %vm743, %vm903
  %vm936 = vmor %vm744, %vm904
  %vm937 = vmor %vm745, %vm905
  %vm938 = vmor %vm746, %vm906
  %vm939 = vmor %vm747, %vm907
  %vm940 = vmor %vm748, %vm908
  %v941 = vadd.s32 %v11, 39
  %v942 = vadd.s32 %v12, 39
  %v943 = vadd.s32 %v13, 39
  %v944 = vadd.s32 %v14, 39
  %v945 = vadd.s32 %v15, 39
  %v946 = vadd.s32 %v16, 39
  %v947 = vadd.s32 %v17, 39
  %v948 = vadd.s32 %v18, 39
  %v949 = vadd.s32 %v19, 39
  %v950 = vadd.s32 %v20, 39
  %v951 = vadd.s32 %v21, 39
  %v952 = vadd.s32 %v22, 39
  %v953 = vadd.s32 %v23, 39
  %v954 = vadd.s32 %v24, 39
  %v955 = vadd.s32 %v25, 39
  %v956 = vadd.s32 %v26, 39
  %v957 = vadd.s32 %v27, 39
  %v958 = vadd.s32 %v28, 39
  %v959 = vadd.s32 %v29, 39
  %v960 = vadd.s32 %v30, 39
  %v961 = vadd.s32 %v31, 39
  %v962 = vadd.s32 %v32, 39
  %v963 = vadd.s32 %v33, 39
  %v964 = vadd.s32 %v34, 39
  %v965 = vadd.s32 %v35, 39
  %v966 = vadd.s32 %v36, 39
  %v967 = vadd.s32 %v37, 39
  %v968 = vadd.s32 %v38, 39
  %v969 = vadd.s32 %v39, 39
  %v970 = vadd.s32 %v40, 39
  %v971 = vadd.s32 %v41, 39
  %v972 = vadd.s32 %v42, 39
  %973 = vset.pattern.permute.xlu0 5
  %974 = vperm.xlu0 %973, %v941
  %v975 = vpop.permute.xlu0 %974
  %976 = vset.pattern.permute.xlu0 5
  %977 = vperm.xlu0 %976, %v942
  %v978 = vpop.permute.xlu0 %977
  %979 = vset.pattern.permute.xlu0 5
  %980 = vperm.xlu0 %979, %v943
  %v981 = vpop.permute.xlu0 %980
  %982 = vset.pattern.permute.xlu0 5
  %983 = vperm.xlu0 %982, %v944
  %v984 = vpop.permute.xlu0 %983
  %985 = vset.pattern.permute.xlu0 5
  %986 = vperm.xlu0 %985, %v945
  %v987 = vpop.permute.xlu0 %986
  %988 = vset.pattern.permute.xlu0 5
  %989 = vperm.xlu0 %988, %v946
  %v990 = vpop.permute.xlu0 %989
  %991 = vset.pattern.permute.xlu0 5
  %992 = vperm.xlu0 %991, %v947
  %v993 = vpop.permute.xlu0 %992
  %994 = vset.pattern.permute.xlu0 5
  %995 = vperm.xlu0 %994, %v948
  %v996 = vpop.permute.xlu0 %995
  %997 = vset.pattern.permute.xlu0 5
  %998 = vperm.xlu0 %997, %v949
  %v999 = vpop.permute.xlu0 %998
  %1000 = vset.pattern.permute.xlu0 5
  %1001 = vperm.xlu0 %1000, %v950
  %v1002 = vpop.permute.xlu0 %1001
  %1003 = vset.pattern.permute.xlu0 5
  %1004 = vperm.xlu0 %1003, %v951
  %v1005 = vpop.permute.xlu0 %1004
  %1006 = vset.pattern.permute.xlu0 5
  %1007 = vperm.xlu0 %1006, %v952
  %v1008 = vpop.permute.xlu0 %1007
  %1009 = vset.pattern.permute.xlu0 5
  %1010 = vperm.xlu0 %1009, %v953
  %v1011 = vpop.permute.xlu0 %1010
  %1012 = vset.pattern.permute.xlu0 5
  %1013 = vperm.xlu0 %1012, %v954
  %v1014 = vpop.permute.xlu0 %1013
  %1015 = vset.pattern.permute.xlu0 5
  %1016 = vperm.xlu0 %1015, %v955
  %v1017 = vpop.permute.xlu0 %1016
  %1018 = vset.pattern.permute.xlu0 5
  %1019 = vperm.xlu0 %1018, %v956
  %v1020 = vpop.permute.xlu0 %1019
  %1021 = vset.pattern.permute.xlu0 5
  %1022 = vperm.xlu0 %1021, %v957
  %v1023 = vpop.permute.xlu0 %1022
  %1024 = vset.pattern.permute.xlu0 5
  %1025 = vperm.xlu0 %1024, %v958
  %v1026 = vpop.permute.xlu0 %1025
  %1027 = vset.pattern.permute.xlu0 5
  %1028 = vperm.xlu0 %1027, %v959
  %v1029 = vpop.permute.xlu0 %1028
  %1030 = vset.pattern.permute.xlu0 5
  %1031 = vperm.xlu0 %1030, %v960
  %v1032 = vpop.permute.xlu0 %1031
  %1033 = vset.pattern.permute.xlu0 5
  %1034 = vperm.xlu0 %1033, %v961
  %v1035 = vpop.permute.xlu0 %1034
  %1036 = vset.pattern.permute.xlu0 5
  %1037 = vperm.xlu0 %1036, %v962
  %v1038 = vpop.permute.xlu0 %1037
  %1039 = vset.pattern.permute.xlu0 5
  %1040 = vperm.xlu0 %1039, %v963
  %v1041 = vpop.permute.xlu0 %1040
  %1042 = vset.pattern.permute.xlu0 5
  %1043 = vperm.xlu0 %1042, %v964
  %v1044 = vpop.permute.xlu0 %1043
  %1045 = vset.pattern.permute.xlu0 5
  %1046 = vperm.xlu0 %1045, %v965
  %v1047 = vpop.permute.xlu0 %1046
  %1048 = vset.pattern.permute.xlu0 5
  %1049 = vperm.xlu0 %1048, %v966
  %v1050 = vpop.permute.xlu0 %1049
  %1051 = vset.pattern.permute.xlu0 5
  %1052 = vperm.xlu0 %1051, %v967
  %v1053 = vpop.permute.xlu0 %1052
  %1054 = vset.pattern.permute.xlu0 5
  %1055 = vperm.xlu0 %1054, %v968
  %v1056 = vpop.permute.xlu0 %1055
  %1057 = vset.pattern.permute.xlu0 5
  %1058 = vperm.xlu0 %1057, %v969
  %v1059 = vpop.permute.xlu0 %1058
  %1060 = vset.pattern.permute.xlu0 5
  %1061 = vperm.xlu0 %1060, %v970
  %v1062 = vpop.permute.xlu0 %1061
  %1063 = vset.pattern.permute.xlu0 5
  %1064 = vperm.xlu0 %1063, %v971
  %v1065 = vpop.permute.xlu0 %1064
  %1066 = vset.pattern.permute.xlu0 5
  %1067 = vperm.xlu0 %1066, %v972
  %v1068 = vpop.permute.xlu0 %1067
  %vm1069 = vcmp.eq.s32.totalorder %v44, %v975
  %vm1070 = vcmp.eq.s32.totalorder %v44, %v978
  %vm1071 = vcmp.eq.s32.totalorder %v44, %v981
  %vm1072 = vcmp.eq.s32.totalorder %v44, %v984
  %vm1073 = vcmp.eq.s32.totalorder %v44, %v987
  %vm1074 = vcmp.eq.s32.totalorder %v44, %v990
  %vm1075 = vcmp.eq.s32.totalorder %v44, %v993
  %vm1076 = vcmp.eq.s32.totalorder %v44, %v996
  %vm1077 = vcmp.eq.s32.totalorder %v44, %v999
  %vm1078 = vcmp.eq.s32.totalorder %v44, %v1002
  %vm1079 = vcmp.eq.s32.totalorder %v44, %v1005
  %vm1080 = vcmp.eq.s32.totalorder %v44, %v1008
  %vm1081 = vcmp.eq.s32.totalorder %v44, %v1011
  %vm1082 = vcmp.eq.s32.totalorder %v44, %v1014
  %vm1083 = vcmp.eq.s32.totalorder %v44, %v1017
  %vm1084 = vcmp.eq.s32.totalorder %v44, %v1020
  %vm1085 = vcmp.eq.s32.totalorder %v44, %v1023
  %vm1086 = vcmp.eq.s32.totalorder %v44, %v1026
  %vm1087 = vcmp.eq.s32.totalorder %v44, %v1029
  %vm1088 = vcmp.eq.s32.totalorder %v44, %v1032
  %vm1089 = vcmp.eq.s32.totalorder %v44, %v1035
  %vm1090 = vcmp.eq.s32.totalorder %v44, %v1038
  %vm1091 = vcmp.eq.s32.totalorder %v44, %v1041
  %vm1092 = vcmp.eq.s32.totalorder %v44, %v1044
  %vm1093 = vcmp.eq.s32.totalorder %v44, %v1047
  %vm1094 = vcmp.eq.s32.totalorder %v44, %v1050
  %vm1095 = vcmp.eq.s32.totalorder %v44, %v1053
  %vm1096 = vcmp.eq.s32.totalorder %v44, %v1056
  %vm1097 = vcmp.eq.s32.totalorder %v44, %v1059
  %vm1098 = vcmp.eq.s32.totalorder %v44, %v1062
  %vm1099 = vcmp.eq.s32.totalorder %v44, %v1065
  %vm1100 = vcmp.eq.s32.totalorder %v44, %v1068
  %vm1101 = vmor %vm909, %vm1069
  %vm1102 = vmor %vm910, %vm1070
  %vm1103 = vmor %vm911, %vm1071
  %vm1104 = vmor %vm912, %vm1072
  %vm1105 = vmor %vm913, %vm1073
  %vm1106 = vmor %vm914, %vm1074
  %vm1107 = vmor %vm915, %vm1075
  %vm1108 = vmor %vm916, %vm1076
  %vm1109 = vmor %vm917, %vm1077
  %vm1110 = vmor %vm918, %vm1078
  %vm1111 = vmor %vm919, %vm1079
  %vm1112 = vmor %vm920, %vm1080
  %vm1113 = vmor %vm921, %vm1081
  %vm1114 = vmor %vm922, %vm1082
  %vm1115 = vmor %vm923, %vm1083
  %vm1116 = vmor %vm924, %vm1084
  %vm1117 = vmor %vm925, %vm1085
  %vm1118 = vmor %vm926, %vm1086
  %vm1119 = vmor %vm927, %vm1087
  %vm1120 = vmor %vm928, %vm1088
  %vm1121 = vmor %vm929, %vm1089
  %vm1122 = vmor %vm930, %vm1090
  %vm1123 = vmor %vm931, %vm1091
  %vm1124 = vmor %vm932, %vm1092
  %vm1125 = vmor %vm933, %vm1093
  %vm1126 = vmor %vm934, %vm1094
  %vm1127 = vmor %vm935, %vm1095
  %vm1128 = vmor %vm936, %vm1096
  %vm1129 = vmor %vm937, %vm1097
  %vm1130 = vmor %vm938, %vm1098
  %vm1131 = vmor %vm939, %vm1099
  %vm1132 = vmor %vm940, %vm1100
  %v1133 = vadd.s32 %v11, 45
  %v1134 = vadd.s32 %v12, 45
  %v1135 = vadd.s32 %v13, 45
  %v1136 = vadd.s32 %v14, 45
  %v1137 = vadd.s32 %v15, 45
  %v1138 = vadd.s32 %v16, 45
  %v1139 = vadd.s32 %v17, 45
  %v1140 = vadd.s32 %v18, 45
  %v1141 = vadd.s32 %v19, 45
  %v1142 = vadd.s32 %v20, 45
  %v1143 = vadd.s32 %v21, 45
  %v1144 = vadd.s32 %v22, 45
  %v1145 = vadd.s32 %v23, 45
  %v1146 = vadd.s32 %v24, 45
  %v1147 = vadd.s32 %v25, 45
  %v1148 = vadd.s32 %v26, 45
  %v1149 = vadd.s32 %v27, 45
  %v1150 = vadd.s32 %v28, 45
  %v1151 = vadd.s32 %v29, 45
  %v1152 = vadd.s32 %v30, 45
  %v1153 = vadd.s32 %v31, 45
  %v1154 = vadd.s32 %v32, 45
  %v1155 = vadd.s32 %v33, 45
  %v1156 = vadd.s32 %v34, 45
  %v1157 = vadd.s32 %v35, 45
  %v1158 = vadd.s32 %v36, 45
  %v1159 = vadd.s32 %v37, 45
  %v1160 = vadd.s32 %v38, 45
  %v1161 = vadd.s32 %v39, 45
  %v1162 = vadd.s32 %v40, 45
  %v1163 = vadd.s32 %v41, 45
  %v1164 = vadd.s32 %v42, 45
  %1165 = vset.pattern.permute.xlu0 6
  %1166 = vperm.xlu0 %1165, %v1133
  %v1167 = vpop.permute.xlu0 %1166
  %1168 = vset.pattern.permute.xlu0 6
  %1169 = vperm.xlu0 %1168, %v1134
  %v1170 = vpop.permute.xlu0 %1169
  %1171 = vset.pattern.permute.xlu0 6
  %1172 = vperm.xlu0 %1171, %v1135
  %v1173 = vpop.permute.xlu0 %1172
  %1174 = vset.pattern.permute.xlu0 6
  %1175 = vperm.xlu0 %1174, %v1136
  %v1176 = vpop.permute.xlu0 %1175
  %1177 = vset.pattern.permute.xlu0 6
  %1178 = vperm.xlu0 %1177, %v1137
  %v1179 = vpop.permute.xlu0 %1178
  %1180 = vset.pattern.permute.xlu0 6
  %1181 = vperm.xlu0 %1180, %v1138
  %v1182 = vpop.permute.xlu0 %1181
  %1183 = vset.pattern.permute.xlu0 6
  %1184 = vperm.xlu0 %1183, %v1139
  %v1185 = vpop.permute.xlu0 %1184
  %1186 = vset.pattern.permute.xlu0 6
  %1187 = vperm.xlu0 %1186, %v1140
  %v1188 = vpop.permute.xlu0 %1187
  %1189 = vset.pattern.permute.xlu0 6
  %1190 = vperm.xlu0 %1189, %v1141
  %v1191 = vpop.permute.xlu0 %1190
  %1192 = vset.pattern.permute.xlu0 6
  %1193 = vperm.xlu0 %1192, %v1142
  %v1194 = vpop.permute.xlu0 %1193
  %1195 = vset.pattern.permute.xlu0 6
  %1196 = vperm.xlu0 %1195, %v1143
  %v1197 = vpop.permute.xlu0 %1196
  %1198 = vset.pattern.permute.xlu0 6
  %1199 = vperm.xlu0 %1198, %v1144
  %v1200 = vpop.permute.xlu0 %1199
  %1201 = vset.pattern.permute.xlu0 6
  %1202 = vperm.xlu0 %1201, %v1145
  %v1203 = vpop.permute.xlu0 %1202
  %1204 = vset.pattern.permute.xlu0 6
  %1205 = vperm.xlu0 %1204, %v1146
  %v1206 = vpop.permute.xlu0 %1205
  %1207 = vset.pattern.permute.xlu0 6
  %1208 = vperm.xlu0 %1207, %v1147
  %v1209 = vpop.permute.xlu0 %1208
  %1210 = vset.pattern.permute.xlu0 6
  %1211 = vperm.xlu0 %1210, %v1148
  %v1212 = vpop.permute.xlu0 %1211
  %1213 = vset.pattern.permute.xlu0 6
  %1214 = vperm.xlu0 %1213, %v1149
  %v1215 = vpop.permute.xlu0 %1214
  %1216 = vset.pattern.permute.xlu0 6
  %1217 = vperm.xlu0 %1216, %v1150
  %v1218 = vpop.permute.xlu0 %1217
  %1219 = vset.pattern.permute.xlu0 6
  %1220 = vperm.xlu0 %1219, %v1151
  %v1221 = vpop.permute.xlu0 %1220
  %1222 = vset.pattern.permute.xlu0 6
  %1223 = vperm.xlu0 %1222, %v1152
  %v1224 = vpop.permute.xlu0 %1223
  %1225 = vset.pattern.permute.xlu0 6
  %1226 = vperm.xlu0 %1225, %v1153
  %v1227 = vpop.permute.xlu0 %1226
  %1228 = vset.pattern.permute.xlu0 6
  %1229 = vperm.xlu0 %1228, %v1154
  %v1230 = vpop.permute.xlu0 %1229
  %1231 = vset.pattern.permute.xlu0 6
  %1232 = vperm.xlu0 %1231, %v1155
  %v1233 = vpop.permute.xlu0 %1232
  %1234 = vset.pattern.permute.xlu0 6
  %1235 = vperm.xlu0 %1234, %v1156
  %v1236 = vpop.permute.xlu0 %1235
  %1237 = vset.pattern.permute.xlu0 6
  %1238 = vperm.xlu0 %1237, %v1157
  %v1239 = vpop.permute.xlu0 %1238
  %1240 = vset.pattern.permute.xlu0 6
  %1241 = vperm.xlu0 %1240, %v1158
  %v1242 = vpop.permute.xlu0 %1241
  %1243 = vset.pattern.permute.xlu0 6
  %1244 = vperm.xlu0 %1243, %v1159
  %v1245 = vpop.permute.xlu0 %1244
  %1246 = vset.pattern.permute.xlu0 6
  %1247 = vperm.xlu0 %1246, %v1160
  %v1248 = vpop.permute.xlu0 %1247
  %1249 = vset.pattern.permute.xlu0 6
  %1250 = vperm.xlu0 %1249, %v1161
  %v1251 = vpop.permute.xlu0 %1250
  %1252 = vset.pattern.permute.xlu0 6
  %1253 = vperm.xlu0 %1252, %v1162
  %v1254 = vpop.permute.xlu0 %1253
  %1255 = vset.pattern.permute.xlu0 6
  %1256 = vperm.xlu0 %1255, %v1163
  %v1257 = vpop.permute.xlu0 %1256
  %1258 = vset.pattern.permute.xlu0 6
  %1259 = vperm.xlu0 %1258, %v1164
  %v1260 = vpop.permute.xlu0 %1259
  %vm1261 = vcmp.eq.s32.totalorder %v44, %v1167
  %vm1262 = vcmp.eq.s32.totalorder %v44, %v1170
  %vm1263 = vcmp.eq.s32.totalorder %v44, %v1173
  %vm1264 = vcmp.eq.s32.totalorder %v44, %v1176
  %vm1265 = vcmp.eq.s32.totalorder %v44, %v1179
  %vm1266 = vcmp.eq.s32.totalorder %v44, %v1182
  %vm1267 = vcmp.eq.s32.totalorder %v44, %v1185
  %vm1268 = vcmp.eq.s32.totalorder %v44, %v1188
  %vm1269 = vcmp.eq.s32.totalorder %v44, %v1191
  %vm1270 = vcmp.eq.s32.totalorder %v44, %v1194
  %vm1271 = vcmp.eq.s32.totalorder %v44, %v1197
  %vm1272 = vcmp.eq.s32.totalorder %v44, %v1200
  %vm1273 = vcmp.eq.s32.totalorder %v44, %v1203
  %vm1274 = vcmp.eq.s32.totalorder %v44, %v1206
  %vm1275 = vcmp.eq.s32.totalorder %v44, %v1209
  %vm1276 = vcmp.eq.s32.totalorder %v44, %v1212
  %vm1277 = vcmp.eq.s32.totalorder %v44, %v1215
  %vm1278 = vcmp.eq.s32.totalorder %v44, %v1218
  %vm1279 = vcmp.eq.s32.totalorder %v44, %v1221
  %vm1280 = vcmp.eq.s32.totalorder %v44, %v1224
  %vm1281 = vcmp.eq.s32.totalorder %v44, %v1227
  %vm1282 = vcmp.eq.s32.totalorder %v44, %v1230
  %vm1283 = vcmp.eq.s32.totalorder %v44, %v1233
  %vm1284 = vcmp.eq.s32.totalorder %v44, %v1236
  %vm1285 = vcmp.eq.s32.totalorder %v44, %v1239
  %vm1286 = vcmp.eq.s32.totalorder %v44, %v1242
  %vm1287 = vcmp.eq.s32.totalorder %v44, %v1245
  %vm1288 = vcmp.eq.s32.totalorder %v44, %v1248
  %vm1289 = vcmp.eq.s32.totalorder %v44, %v1251
  %vm1290 = vcmp.eq.s32.totalorder %v44, %v1254
  %vm1291 = vcmp.eq.s32.totalorder %v44, %v1257
  %vm1292 = vcmp.eq.s32.totalorder %v44, %v1260
  %vm1293 = vmor %vm1101, %vm1261
  %vm1294 = vmor %vm1102, %vm1262
  %vm1295 = vmor %vm1103, %vm1263
  %vm1296 = vmor %vm1104, %vm1264
  %vm1297 = vmor %vm1105, %vm1265
  %vm1298 = vmor %vm1106, %vm1266
  %vm1299 = vmor %vm1107, %vm1267
  %vm1300 = vmor %vm1108, %vm1268
  %vm1301 = vmor %vm1109, %vm1269
  %vm1302 = vmor %vm1110, %vm1270
  %vm1303 = vmor %vm1111, %vm1271
  %vm1304 = vmor %vm1112, %vm1272
  %vm1305 = vmor %vm1113, %vm1273
  %vm1306 = vmor %vm1114, %vm1274
  %vm1307 = vmor %vm1115, %vm1275
  %vm1308 = vmor %vm1116, %vm1276
  %vm1309 = vmor %vm1117, %vm1277
  %vm1310 = vmor %vm1118, %vm1278
  %vm1311 = vmor %vm1119, %vm1279
  %vm1312 = vmor %vm1120, %vm1280
  %vm1313 = vmor %vm1121, %vm1281
  %vm1314 = vmor %vm1122, %vm1282
  %vm1315 = vmor %vm1123, %vm1283
  %vm1316 = vmor %vm1124, %vm1284
  %vm1317 = vmor %vm1125, %vm1285
  %vm1318 = vmor %vm1126, %vm1286
  %vm1319 = vmor %vm1127, %vm1287
  %vm1320 = vmor %vm1128, %vm1288
  %vm1321 = vmor %vm1129, %vm1289
  %vm1322 = vmor %vm1130, %vm1290
  %vm1323 = vmor %vm1131, %vm1291
  %vm1324 = vmor %vm1132, %vm1292
  %v1325 = vadd.s32 %v11, 51
  %v1326 = vadd.s32 %v12, 51
  %v1327 = vadd.s32 %v13, 51
  %v1328 = vadd.s32 %v14, 51
  %v1329 = vadd.s32 %v15, 51
  %v1330 = vadd.s32 %v16, 51
  %v1331 = vadd.s32 %v17, 51
  %v1332 = vadd.s32 %v18, 51
  %v1333 = vadd.s32 %v19, 51
  %v1334 = vadd.s32 %v20, 51
  %v1335 = vadd.s32 %v21, 51
  %v1336 = vadd.s32 %v22, 51
  %v1337 = vadd.s32 %v23, 51
  %v1338 = vadd.s32 %v24, 51
  %v1339 = vadd.s32 %v25, 51
  %v1340 = vadd.s32 %v26, 51
  %v1341 = vadd.s32 %v27, 51
  %v1342 = vadd.s32 %v28, 51
  %v1343 = vadd.s32 %v29, 51
  %v1344 = vadd.s32 %v30, 51
  %v1345 = vadd.s32 %v31, 51
  %v1346 = vadd.s32 %v32, 51
  %v1347 = vadd.s32 %v33, 51
  %v1348 = vadd.s32 %v34, 51
  %v1349 = vadd.s32 %v35, 51
  %v1350 = vadd.s32 %v36, 51
  %v1351 = vadd.s32 %v37, 51
  %v1352 = vadd.s32 %v38, 51
  %v1353 = vadd.s32 %v39, 51
  %v1354 = vadd.s32 %v40, 51
  %v1355 = vadd.s32 %v41, 51
  %v1356 = vadd.s32 %v42, 51
  %1357 = vset.pattern.permute.xlu0 7
  %1358 = vperm.xlu0 %1357, %v1325
  %v1359 = vpop.permute.xlu0 %1358
  %1360 = vset.pattern.permute.xlu0 7
  %1361 = vperm.xlu0 %1360, %v1326
  %v1362 = vpop.permute.xlu0 %1361
  %1363 = vset.pattern.permute.xlu0 7
  %1364 = vperm.xlu0 %1363, %v1327
  %v1365 = vpop.permute.xlu0 %1364
  %1366 = vset.pattern.permute.xlu0 7
  %1367 = vperm.xlu0 %1366, %v1328
  %v1368 = vpop.permute.xlu0 %1367
  %1369 = vset.pattern.permute.xlu0 7
  %1370 = vperm.xlu0 %1369, %v1329
  %v1371 = vpop.permute.xlu0 %1370
  %1372 = vset.pattern.permute.xlu0 7
  %1373 = vperm.xlu0 %1372, %v1330
  %v1374 = vpop.permute.xlu0 %1373
  %1375 = vset.pattern.permute.xlu0 7
  %1376 = vperm.xlu0 %1375, %v1331
  %v1377 = vpop.permute.xlu0 %1376
  %1378 = vset.pattern.permute.xlu0 7
  %1379 = vperm.xlu0 %1378, %v1332
  %v1380 = vpop.permute.xlu0 %1379
  %1381 = vset.pattern.permute.xlu0 7
  %1382 = vperm.xlu0 %1381, %v1333
  %v1383 = vpop.permute.xlu0 %1382
  %1384 = vset.pattern.permute.xlu0 7
  %1385 = vperm.xlu0 %1384, %v1334
  %v1386 = vpop.permute.xlu0 %1385
  %1387 = vset.pattern.permute.xlu0 7
  %1388 = vperm.xlu0 %1387, %v1335
  %v1389 = vpop.permute.xlu0 %1388
  %1390 = vset.pattern.permute.xlu0 7
  %1391 = vperm.xlu0 %1390, %v1336
  %v1392 = vpop.permute.xlu0 %1391
  %1393 = vset.pattern.permute.xlu0 7
  %1394 = vperm.xlu0 %1393, %v1337
  %v1395 = vpop.permute.xlu0 %1394
  %1396 = vset.pattern.permute.xlu0 7
  %1397 = vperm.xlu0 %1396, %v1338
  %v1398 = vpop.permute.xlu0 %1397
  %1399 = vset.pattern.permute.xlu0 7
  %1400 = vperm.xlu0 %1399, %v1339
  %v1401 = vpop.permute.xlu0 %1400
  %1402 = vset.pattern.permute.xlu0 7
  %1403 = vperm.xlu0 %1402, %v1340
  %v1404 = vpop.permute.xlu0 %1403
  %1405 = vset.pattern.permute.xlu0 7
  %1406 = vperm.xlu0 %1405, %v1341
  %v1407 = vpop.permute.xlu0 %1406
  %1408 = vset.pattern.permute.xlu0 7
  %1409 = vperm.xlu0 %1408, %v1342
  %v1410 = vpop.permute.xlu0 %1409
  %1411 = vset.pattern.permute.xlu0 7
  %1412 = vperm.xlu0 %1411, %v1343
  %v1413 = vpop.permute.xlu0 %1412
  %1414 = vset.pattern.permute.xlu0 7
  %1415 = vperm.xlu0 %1414, %v1344
  %v1416 = vpop.permute.xlu0 %1415
  %1417 = vset.pattern.permute.xlu0 7
  %1418 = vperm.xlu0 %1417, %v1345
  %v1419 = vpop.permute.xlu0 %1418
  %1420 = vset.pattern.permute.xlu0 7
  %1421 = vperm.xlu0 %1420, %v1346
  %v1422 = vpop.permute.xlu0 %1421
  %1423 = vset.pattern.permute.xlu0 7
  %1424 = vperm.xlu0 %1423, %v1347
  %v1425 = vpop.permute.xlu0 %1424
  %1426 = vset.pattern.permute.xlu0 7
  %1427 = vperm.xlu0 %1426, %v1348
  %v1428 = vpop.permute.xlu0 %1427
  %1429 = vset.pattern.permute.xlu0 7
  %1430 = vperm.xlu0 %1429, %v1349
  %v1431 = vpop.permute.xlu0 %1430
  %1432 = vset.pattern.permute.xlu0 7
  %1433 = vperm.xlu0 %1432, %v1350
  %v1434 = vpop.permute.xlu0 %1433
  %1435 = vset.pattern.permute.xlu0 7
  %1436 = vperm.xlu0 %1435, %v1351
  %v1437 = vpop.permute.xlu0 %1436
  %1438 = vset.pattern.permute.xlu0 7
  %1439 = vperm.xlu0 %1438, %v1352
  %v1440 = vpop.permute.xlu0 %1439
  %1441 = vset.pattern.permute.xlu0 7
  %1442 = vperm.xlu0 %1441, %v1353
  %v1443 = vpop.permute.xlu0 %1442
  %1444 = vset.pattern.permute.xlu0 7
  %1445 = vperm.xlu0 %1444, %v1354
  %v1446 = vpop.permute.xlu0 %1445
  %1447 = vset.pattern.permute.xlu0 7
  %1448 = vperm.xlu0 %1447, %v1355
  %v1449 = vpop.permute.xlu0 %1448
  %1450 = vset.pattern.permute.xlu0 7
  %1451 = vperm.xlu0 %1450, %v1356
  %v1452 = vpop.permute.xlu0 %1451
  %vm1453 = vcmp.eq.s32.totalorder %v44, %v1359
  %vm1454 = vcmp.eq.s32.totalorder %v44, %v1362
  %vm1455 = vcmp.eq.s32.totalorder %v44, %v1365
  %vm1456 = vcmp.eq.s32.totalorder %v44, %v1368
  %vm1457 = vcmp.eq.s32.totalorder %v44, %v1371
  %vm1458 = vcmp.eq.s32.totalorder %v44, %v1374
  %vm1459 = vcmp.eq.s32.totalorder %v44, %v1377
  %vm1460 = vcmp.eq.s32.totalorder %v44, %v1380
  %vm1461 = vcmp.eq.s32.totalorder %v44, %v1383
  %vm1462 = vcmp.eq.s32.totalorder %v44, %v1386
  %vm1463 = vcmp.eq.s32.totalorder %v44, %v1389
  %vm1464 = vcmp.eq.s32.totalorder %v44, %v1392
  %vm1465 = vcmp.eq.s32.totalorder %v44, %v1395
  %vm1466 = vcmp.eq.s32.totalorder %v44, %v1398
  %vm1467 = vcmp.eq.s32.totalorder %v44, %v1401
  %vm1468 = vcmp.eq.s32.totalorder %v44, %v1404
  %vm1469 = vcmp.eq.s32.totalorder %v44, %v1407
  %vm1470 = vcmp.eq.s32.totalorder %v44, %v1410
  %vm1471 = vcmp.eq.s32.totalorder %v44, %v1413
  %vm1472 = vcmp.eq.s32.totalorder %v44, %v1416
  %vm1473 = vcmp.eq.s32.totalorder %v44, %v1419
  %vm1474 = vcmp.eq.s32.totalorder %v44, %v1422
  %vm1475 = vcmp.eq.s32.totalorder %v44, %v1425
  %vm1476 = vcmp.eq.s32.totalorder %v44, %v1428
  %vm1477 = vcmp.eq.s32.totalorder %v44, %v1431
  %vm1478 = vcmp.eq.s32.totalorder %v44, %v1434
  %vm1479 = vcmp.eq.s32.totalorder %v44, %v1437
  %vm1480 = vcmp.eq.s32.totalorder %v44, %v1440
  %vm1481 = vcmp.eq.s32.totalorder %v44, %v1443
  %vm1482 = vcmp.eq.s32.totalorder %v44, %v1446
  %vm1483 = vcmp.eq.s32.totalorder %v44, %v1449
  %vm1484 = vcmp.eq.s32.totalorder %v44, %v1452
  %vm1485 = vmor %vm1293, %vm1453
  %vm1486 = vmor %vm1294, %vm1454
  %vm1487 = vmor %vm1295, %vm1455
  %vm1488 = vmor %vm1296, %vm1456
  %vm1489 = vmor %vm1297, %vm1457
  %vm1490 = vmor %vm1298, %vm1458
  %vm1491 = vmor %vm1299, %vm1459
  %vm1492 = vmor %vm1300, %vm1460
  %vm1493 = vmor %vm1301, %vm1461
  %vm1494 = vmor %vm1302, %vm1462
  %vm1495 = vmor %vm1303, %vm1463
  %vm1496 = vmor %vm1304, %vm1464
  %vm1497 = vmor %vm1305, %vm1465
  %vm1498 = vmor %vm1306, %vm1466
  %vm1499 = vmor %vm1307, %vm1467
  %vm1500 = vmor %vm1308, %vm1468
  %vm1501 = vmor %vm1309, %vm1469
  %vm1502 = vmor %vm1310, %vm1470
  %vm1503 = vmor %vm1311, %vm1471
  %vm1504 = vmor %vm1312, %vm1472
  %vm1505 = vmor %vm1313, %vm1473
  %vm1506 = vmor %vm1314, %vm1474
  %vm1507 = vmor %vm1315, %vm1475
  %vm1508 = vmor %vm1316, %vm1476
  %vm1509 = vmor %vm1317, %vm1477
  %vm1510 = vmor %vm1318, %vm1478
  %vm1511 = vmor %vm1319, %vm1479
  %vm1512 = vmor %vm1320, %vm1480
  %vm1513 = vmor %vm1321, %vm1481
  %vm1514 = vmor %vm1322, %vm1482
  %vm1515 = vmor %vm1323, %vm1483
  %vm1516 = vmor %vm1324, %vm1484
  %v1517 = vadd.s32 %v11, 53
  %v1518 = vadd.s32 %v12, 53
  %v1519 = vadd.s32 %v13, 53
  %v1520 = vadd.s32 %v14, 53
  %v1521 = vadd.s32 %v15, 53
  %v1522 = vadd.s32 %v16, 53
  %v1523 = vadd.s32 %v17, 53
  %v1524 = vadd.s32 %v18, 53
  %v1525 = vadd.s32 %v19, 53
  %v1526 = vadd.s32 %v20, 53
  %v1527 = vadd.s32 %v21, 53
  %v1528 = vadd.s32 %v22, 53
  %v1529 = vadd.s32 %v23, 53
  %v1530 = vadd.s32 %v24, 53
  %v1531 = vadd.s32 %v25, 53
  %v1532 = vadd.s32 %v26, 53
  %v1533 = vadd.s32 %v27, 53
  %v1534 = vadd.s32 %v28, 53
  %v1535 = vadd.s32 %v29, 53
  %v1536 = vadd.s32 %v30, 53
  %v1537 = vadd.s32 %v31, 53
  %v1538 = vadd.s32 %v32, 53
  %v1539 = vadd.s32 %v33, 53
  %v1540 = vadd.s32 %v34, 53
  %v1541 = vadd.s32 %v35, 53
  %v1542 = vadd.s32 %v36, 53
  %v1543 = vadd.s32 %v37, 53
  %v1544 = vadd.s32 %v38, 53
  %v1545 = vadd.s32 %v39, 53
  %v1546 = vadd.s32 %v40, 53
  %v1547 = vadd.s32 %v41, 53
  %v1548 = vadd.s32 %v42, 53
  %1549 = vset.pattern.permute.xlu0 8
  %1550 = vperm.xlu0 %1549, %v1517
  %v1551 = vpop.permute.xlu0 %1550
  %1552 = vset.pattern.permute.xlu0 8
  %1553 = vperm.xlu0 %1552, %v1518
  %v1554 = vpop.permute.xlu0 %1553
  %1555 = vset.pattern.permute.xlu0 8
  %1556 = vperm.xlu0 %1555, %v1519
  %v1557 = vpop.permute.xlu0 %1556
  %1558 = vset.pattern.permute.xlu0 8
  %1559 = vperm.xlu0 %1558, %v1520
  %v1560 = vpop.permute.xlu0 %1559
  %1561 = vset.pattern.permute.xlu0 8
  %1562 = vperm.xlu0 %1561, %v1521
  %v1563 = vpop.permute.xlu0 %1562
  %1564 = vset.pattern.permute.xlu0 8
  %1565 = vperm.xlu0 %1564, %v1522
  %v1566 = vpop.permute.xlu0 %1565
  %1567 = vset.pattern.permute.xlu0 8
  %1568 = vperm.xlu0 %1567, %v1523
  %v1569 = vpop.permute.xlu0 %1568
  %1570 = vset.pattern.permute.xlu0 8
  %1571 = vperm.xlu0 %1570, %v1524
  %v1572 = vpop.permute.xlu0 %1571
  %1573 = vset.pattern.permute.xlu0 8
  %1574 = vperm.xlu0 %1573, %v1525
  %v1575 = vpop.permute.xlu0 %1574
  %1576 = vset.pattern.permute.xlu0 8
  %1577 = vperm.xlu0 %1576, %v1526
  %v1578 = vpop.permute.xlu0 %1577
  %1579 = vset.pattern.permute.xlu0 8
  %1580 = vperm.xlu0 %1579, %v1527
  %v1581 = vpop.permute.xlu0 %1580
  %1582 = vset.pattern.permute.xlu0 8
  %1583 = vperm.xlu0 %1582, %v1528
  %v1584 = vpop.permute.xlu0 %1583
  %1585 = vset.pattern.permute.xlu0 8
  %1586 = vperm.xlu0 %1585, %v1529
  %v1587 = vpop.permute.xlu0 %1586
  %1588 = vset.pattern.permute.xlu0 8
  %1589 = vperm.xlu0 %1588, %v1530
  %v1590 = vpop.permute.xlu0 %1589
  %1591 = vset.pattern.permute.xlu0 8
  %1592 = vperm.xlu0 %1591, %v1531
  %v1593 = vpop.permute.xlu0 %1592
  %1594 = vset.pattern.permute.xlu0 8
  %1595 = vperm.xlu0 %1594, %v1532
  %v1596 = vpop.permute.xlu0 %1595
  %1597 = vset.pattern.permute.xlu0 8
  %1598 = vperm.xlu0 %1597, %v1533
  %v1599 = vpop.permute.xlu0 %1598
  %1600 = vset.pattern.permute.xlu0 8
  %1601 = vperm.xlu0 %1600, %v1534
  %v1602 = vpop.permute.xlu0 %1601
  %1603 = vset.pattern.permute.xlu0 8
  %1604 = vperm.xlu0 %1603, %v1535
  %v1605 = vpop.permute.xlu0 %1604
  %1606 = vset.pattern.permute.xlu0 8
  %1607 = vperm.xlu0 %1606, %v1536
  %v1608 = vpop.permute.xlu0 %1607
  %1609 = vset.pattern.permute.xlu0 8
  %1610 = vperm.xlu0 %1609, %v1537
  %v1611 = vpop.permute.xlu0 %1610
  %1612 = vset.pattern.permute.xlu0 8
  %1613 = vperm.xlu0 %1612, %v1538
  %v1614 = vpop.permute.xlu0 %1613
  %1615 = vset.pattern.permute.xlu0 8
  %1616 = vperm.xlu0 %1615, %v1539
  %v1617 = vpop.permute.xlu0 %1616
  %1618 = vset.pattern.permute.xlu0 8
  %1619 = vperm.xlu0 %1618, %v1540
  %v1620 = vpop.permute.xlu0 %1619
  %1621 = vset.pattern.permute.xlu0 8
  %1622 = vperm.xlu0 %1621, %v1541
  %v1623 = vpop.permute.xlu0 %1622
  %1624 = vset.pattern.permute.xlu0 8
  %1625 = vperm.xlu0 %1624, %v1542
  %v1626 = vpop.permute.xlu0 %1625
  %1627 = vset.pattern.permute.xlu0 8
  %1628 = vperm.xlu0 %1627, %v1543
  %v1629 = vpop.permute.xlu0 %1628
  %1630 = vset.pattern.permute.xlu0 8
  %1631 = vperm.xlu0 %1630, %v1544
  %v1632 = vpop.permute.xlu0 %1631
  %1633 = vset.pattern.permute.xlu0 8
  %1634 = vperm.xlu0 %1633, %v1545
  %v1635 = vpop.permute.xlu0 %1634
  %1636 = vset.pattern.permute.xlu0 8
  %1637 = vperm.xlu0 %1636, %v1546
  %v1638 = vpop.permute.xlu0 %1637
  %1639 = vset.pattern.permute.xlu0 8
  %1640 = vperm.xlu0 %1639, %v1547
  %v1641 = vpop.permute.xlu0 %1640
  %1642 = vset.pattern.permute.xlu0 8
  %1643 = vperm.xlu0 %1642, %v1548
  %v1644 = vpop.permute.xlu0 %1643
  %vm1645 = vcmp.eq.s32.totalorder %v44, %v1551
  %vm1646 = vcmp.eq.s32.totalorder %v44, %v1554
  %vm1647 = vcmp.eq.s32.totalorder %v44, %v1557
  %vm1648 = vcmp.eq.s32.totalorder %v44, %v1560
  %vm1649 = vcmp.eq.s32.totalorder %v44, %v1563
  %vm1650 = vcmp.eq.s32.totalorder %v44, %v1566
  %vm1651 = vcmp.eq.s32.totalorder %v44, %v1569
  %vm1652 = vcmp.eq.s32.totalorder %v44, %v1572
  %vm1653 = vcmp.eq.s32.totalorder %v44, %v1575
  %vm1654 = vcmp.eq.s32.totalorder %v44, %v1578
  %vm1655 = vcmp.eq.s32.totalorder %v44, %v1581
  %vm1656 = vcmp.eq.s32.totalorder %v44, %v1584
  %vm1657 = vcmp.eq.s32.totalorder %v44, %v1587
  %vm1658 = vcmp.eq.s32.totalorder %v44, %v1590
  %vm1659 = vcmp.eq.s32.totalorder %v44, %v1593
  %vm1660 = vcmp.eq.s32.totalorder %v44, %v1596
  %vm1661 = vcmp.eq.s32.totalorder %v44, %v1599
  %vm1662 = vcmp.eq.s32.totalorder %v44, %v1602
  %vm1663 = vcmp.eq.s32.totalorder %v44, %v1605
  %vm1664 = vcmp.eq.s32.totalorder %v44, %v1608
  %vm1665 = vcmp.eq.s32.totalorder %v44, %v1611
  %vm1666 = vcmp.eq.s32.totalorder %v44, %v1614
  %vm1667 = vcmp.eq.s32.totalorder %v44, %v1617
  %vm1668 = vcmp.eq.s32.totalorder %v44, %v1620
  %vm1669 = vcmp.eq.s32.totalorder %v44, %v1623
  %vm1670 = vcmp.eq.s32.totalorder %v44, %v1626
  %vm1671 = vcmp.eq.s32.totalorder %v44, %v1629
  %vm1672 = vcmp.eq.s32.totalorder %v44, %v1632
  %vm1673 = vcmp.eq.s32.totalorder %v44, %v1635
  %vm1674 = vcmp.eq.s32.totalorder %v44, %v1638
  %vm1675 = vcmp.eq.s32.totalorder %v44, %v1641
  %vm1676 = vcmp.eq.s32.totalorder %v44, %v1644
  %vm1677 = vmor %vm1485, %vm1645
  %vm1678 = vmor %vm1486, %vm1646
  %vm1679 = vmor %vm1487, %vm1647
  %vm1680 = vmor %vm1488, %vm1648
  %vm1681 = vmor %vm1489, %vm1649
  %vm1682 = vmor %vm1490, %vm1650
  %vm1683 = vmor %vm1491, %vm1651
  %vm1684 = vmor %vm1492, %vm1652
  %vm1685 = vmor %vm1493, %vm1653
  %vm1686 = vmor %vm1494, %vm1654
  %vm1687 = vmor %vm1495, %vm1655
  %vm1688 = vmor %vm1496, %vm1656
  %vm1689 = vmor %vm1497, %vm1657
  %vm1690 = vmor %vm1498, %vm1658
  %vm1691 = vmor %vm1499, %vm1659
  %vm1692 = vmor %vm1500, %vm1660
  %vm1693 = vmor %vm1501, %vm1661
  %vm1694 = vmor %vm1502, %vm1662
  %vm1695 = vmor %vm1503, %vm1663
  %vm1696 = vmor %vm1504, %vm1664
  %vm1697 = vmor %vm1505, %vm1665
  %vm1698 = vmor %vm1506, %vm1666
  %vm1699 = vmor %vm1507, %vm1667
  %vm1700 = vmor %vm1508, %vm1668
  %vm1701 = vmor %vm1509, %vm1669
  %vm1702 = vmor %vm1510, %vm1670
  %vm1703 = vmor %vm1511, %vm1671
  %vm1704 = vmor %vm1512, %vm1672
  %vm1705 = vmor %vm1513, %vm1673
  %vm1706 = vmor %vm1514, %vm1674
  %vm1707 = vmor %vm1515, %vm1675
  %vm1708 = vmor %vm1516, %vm1676
  %v1709 = vsel %vm1677, 1, 0
  %v1710 = vsel %vm1678, 1, 0
  %v1711 = vsel %vm1679, 1, 0
  %v1712 = vsel %vm1680, 1, 0
  %v1713 = vsel %vm1681, 1, 0
  %v1714 = vsel %vm1682, 1, 0
  %v1715 = vsel %vm1683, 1, 0
  %v1716 = vsel %vm1684, 1, 0
  %v1717 = vsel %vm1685, 1, 0
  %v1718 = vsel %vm1686, 1, 0
  %v1719 = vsel %vm1687, 1, 0
  %v1720 = vsel %vm1688, 1, 0
  %v1721 = vsel %vm1689, 1, 0
  %v1722 = vsel %vm1690, 1, 0
  %v1723 = vsel %vm1691, 1, 0
  %v1724 = vsel %vm1692, 1, 0
  %v1725 = vsel %vm1693, 1, 0
  %v1726 = vsel %vm1694, 1, 0
  %v1727 = vsel %vm1695, 1, 0
  %v1728 = vsel %vm1696, 1, 0
  %v1729 = vsel %vm1697, 1, 0
  %v1730 = vsel %vm1698, 1, 0
  %v1731 = vsel %vm1699, 1, 0
  %v1732 = vsel %vm1700, 1, 0
  %v1733 = vsel %vm1701, 1, 0
  %v1734 = vsel %vm1702, 1, 0
  %v1735 = vsel %vm1703, 1, 0
  %v1736 = vsel %vm1704, 1, 0
  %v1737 = vsel %vm1705, 1, 0
  %v1738 = vsel %vm1706, 1, 0
  %v1739 = vsel %vm1707, 1, 0
  %v1740 = vsel %vm1708, 1, 0
  %v1741 = vcvt.s32.f32 %v1709
  %v1742 = vcvt.s32.f32 %v1710
  %v1743 = vcvt.s32.f32 %v1711
  %v1744 = vcvt.s32.f32 %v1712
  %v1745 = vcvt.s32.f32 %v1713
  %v1746 = vcvt.s32.f32 %v1714
  %v1747 = vcvt.s32.f32 %v1715
  %v1748 = vcvt.s32.f32 %v1716
  %v1749 = vcvt.s32.f32 %v1717
  %v1750 = vcvt.s32.f32 %v1718
  %v1751 = vcvt.s32.f32 %v1719
  %v1752 = vcvt.s32.f32 %v1720
  %v1753 = vcvt.s32.f32 %v1721
  %v1754 = vcvt.s32.f32 %v1722
  %v1755 = vcvt.s32.f32 %v1723
  %v1756 = vcvt.s32.f32 %v1724
  %v1757 = vcvt.s32.f32 %v1725
  %v1758 = vcvt.s32.f32 %v1726
  %v1759 = vcvt.s32.f32 %v1727
  %v1760 = vcvt.s32.f32 %v1728
  %v1761 = vcvt.s32.f32 %v1729
  %v1762 = vcvt.s32.f32 %v1730
  %v1763 = vcvt.s32.f32 %v1731
  %v1764 = vcvt.s32.f32 %v1732
  %v1765 = vcvt.s32.f32 %v1733
  %v1766 = vcvt.s32.f32 %v1734
  %v1767 = vcvt.s32.f32 %v1735
  %v1768 = vcvt.s32.f32 %v1736
  %v1769 = vcvt.s32.f32 %v1737
  %v1770 = vcvt.s32.f32 %v1738
  %v1771 = vcvt.s32.f32 %v1739
  %v1772 = vcvt.s32.f32 %v1740
  %v1773 = vld [vmem:[%s1] sm:$0xff]
  %v1774 = vld [vmem:[%s1 + $0x8] sm:$0xff]
  %v1775 = vld [vmem:[%s1 + $0x10] sm:$0xff]
  %v1776 = vld [vmem:[%s1 + $0x18] sm:$0xff]
  %v1777 = vld [vmem:[%s1 + $0x20] sm:$0xff]
  %v1778 = vld [vmem:[%s1 + $0x28] sm:$0xff]
  %v1779 = vld [vmem:[%s1 + $0x30] sm:$0xff]
  %v1780 = vld [vmem:[%s1 + $0x38] sm:$0xff]
  %v1781 = vld [vmem:[%s1 + $0x40] sm:$0xff]
  %v1782 = vld [vmem:[%s1 + $0x48] sm:$0xff]
  %v1783 = vld [vmem:[%s1 + $0x50] sm:$0xff]
  %v1784 = vld [vmem:[%s1 + $0x58] sm:$0xff]
  %v1785 = vld [vmem:[%s1 + $0x60] sm:$0xff]
  %v1786 = vld [vmem:[%s1 + $0x68] sm:$0xff]
  %v1787 = vld [vmem:[%s1 + $0x70] sm:$0xff]
  %v1788 = vld [vmem:[%s1 + $0x78] sm:$0xff]
  %v1789 = vld [vmem:[%s1 + $0x80] sm:$0xff]
  %v1790 = vld [vmem:[%s1 + $0x88] sm:$0xff]
  %v1791 = vld [vmem:[%s1 + $0x90] sm:$0xff]
  %v1792 = vld [vmem:[%s1 + $0x98] sm:$0xff]
  %v1793 = vld [vmem:[%s1 + $0xa0] sm:$0xff]
  %v1794 = vld [vmem:[%s1 + $0xa8] sm:$0xff]
  %v1795 = vld [vmem:[%s1 + $0xb0] sm:$0xff]
  %v1796 = vld [vmem:[%s1 + $0xb8] sm:$0xff]
  %v1797 = vld [vmem:[%s1 + $0xc0] sm:$0xff]
  %v1798 = vld [vmem:[%s1 + $0xc8] sm:$0xff]
  %v1799 = vld [vmem:[%s1 + $0xd0] sm:$0xff]
  %v1800 = vld [vmem:[%s1 + $0xd8] sm:$0xff]
  %v1801 = vld [vmem:[%s1 + $0xe0] sm:$0xff]
  %v1802 = vld [vmem:[%s1 + $0xe8] sm:$0xff]
  %v1803 = vld [vmem:[%s1 + $0xf0] sm:$0xff]
  %v1804 = vld [vmem:[%s1 + $0xf8] sm:$0xff]
  %1805 = vmatprep.subr.mxu0 0.0
  %1806 = vmatpush1.msra.mxu0 %v1789
  %1807 = vmatprep.subr.mxu0 0.0
  %1808 = vmatpush1.msra.mxu0 %v1790
  %1809 = vmatprep.subr.mxu0 0.0
  %1810 = vmatpush1.msra.mxu0 %v1791
  %1811 = vmatprep.subr.mxu0 0.0
  %1812 = vmatpush1.msra.mxu0 %v1792
  %1813 = vmatprep.subr.mxu0 0.0
  %1814 = vmatpush1.msra.mxu0 %v1793
  %1815 = vmatprep.subr.mxu0 0.0
  %1816 = vmatpush1.msra.mxu0 %v1794
  %1817 = vmatprep.subr.mxu0 0.0
  %1818 = vmatpush1.msra.mxu0 %v1795
  %1819 = vmatprep.subr.mxu0 0.0
  %1820 = vmatpush1.msra.mxu0 %v1796
  %1821 = vmatprep.subr.mxu0 0.0
  %1822 = vmatpush1.msra.mxu0 %v1797
  %1823 = vmatprep.subr.mxu0 0.0
  %1824 = vmatpush1.msra.mxu0 %v1798
  %1825 = vmatprep.subr.mxu0 0.0
  %1826 = vmatpush1.msra.mxu0 %v1799
  %1827 = vmatprep.subr.mxu0 0.0
  %1828 = vmatpush1.msra.mxu0 %v1800
  %1829 = vmatprep.subr.mxu0 0.0
  %1830 = vmatpush1.msra.mxu0 %v1801
  %1831 = vmatprep.subr.mxu0 0.0
  %1832 = vmatpush1.msra.mxu0 %v1802
  %1833 = vmatprep.subr.mxu0 0.0
  %1834 = vmatpush1.msra.mxu0 %v1803
  %1835 = vmatprep.subr.mxu0 0.0
  %1836 = vmatpush1.msra.mxu0 %v1804
  %1837 = vmatprep.subr.mxu0 0.0
  %1838 = vmatpush1.msra.mxu0 0.0
  %1839 = vmatprep.subr.mxu0 0.0
  %1840 = vmatpush1.msra.mxu0 0.0
  %1841 = vmatprep.subr.mxu0 0.0
  %1842 = vmatpush1.msra.mxu0 0.0
  %1843 = vmatprep.subr.mxu0 0.0
  %1844 = vmatpush1.msra.mxu0 0.0
  %1845 = vmatprep.subr.mxu0 0.0
  %1846 = vmatpush1.msra.mxu0 0.0
  %1847 = vmatprep.subr.mxu0 0.0
  %1848 = vmatpush1.msra.mxu0 0.0
  %1849 = vmatprep.subr.mxu0 0.0
  %1850 = vmatpush1.msra.mxu0 0.0
  %1851 = vmatprep.subr.mxu0 0.0
  %1852 = vmatpush1.msra.mxu0 0.0
  %1853 = vmatprep.subr.mxu0 0.0
  %1854 = vmatpush1.msra.mxu0 0.0
  %1855 = vmatprep.subr.mxu0 0.0
  %1856 = vmatpush1.msra.mxu0 0.0
  %1857 = vmatprep.subr.mxu0 0.0
  %1858 = vmatpush1.msra.mxu0 0.0
  %1859 = vmatprep.subr.mxu0 0.0
  %1860 = vmatpush1.msra.mxu0 0.0
  %1861 = vmatprep.subr.mxu0 0.0
  %1862 = vmatpush1.msra.mxu0 0.0
  %1863 = vmatprep.subr.mxu0 0.0
  %1864 = vmatpush1.msra.mxu0 0.0
  %1865 = vmatprep.subr.mxu0 0.0
  %1866 = vmatpush1.msra.mxu0 0.0
  %1867 = vmatprep.subr.mxu0 0.0
  %1868 = vmatpush1.msra.mxu0 0.0
  %1869 = vmatprep.mubr.f32.mxu0 0.0
  %1870 = vmatmul.mubr.f32.gmra.mrb[0].mxu0 %v1741
  %v1871 = vpop.f32.mrb[0].mxu0
  %v1872 = vadd.f32 0.0, %v1871
  %v1873 = vpop.f32.mrb[0].mxu0
  %1874 = vmatprep.mubr.f32.mxu0 0.0
  %1875 = vmatmul.mubr.f32.gmra.mrb[0].mxu0 %v1742
  %v1876 = vpop.f32.mrb[0].mxu0
  %v1877 = vadd.f32 0.0, %v1876
  %v1878 = vpop.f32.mrb[0].mxu0
  %1879 = vmatprep.mubr.f32.mxu0 0.0
  %1880 = vmatmul.mubr.f32.gmra.mrb[0].mxu0 %v1743
  %v1881 = vpop.f32.mrb[0].mxu0
  %v1882 = vadd.f32 0.0, %v1881
  %v1883 = vpop.f32.mrb[0].mxu0
  %1884 = vmatprep.mubr.f32.mxu0 0.0
  %1885 = vmatmul.mubr.f32.gmra.mrb[0].mxu0 %v1744
  %v1886 = vpop.f32.mrb[0].mxu0
  %v1887 = vadd.f32 0.0, %v1886
  %v1888 = vpop.f32.mrb[0].mxu0
  %1889 = vmatprep.mubr.f32.mxu0 0.0
  %1890 = vmatmul.mubr.f32.gmra.mrb[0].mxu0 %v1745
  %v1891 = vpop.f32.mrb[0].mxu0
  %v1892 = vadd.f32 0.0, %v1891
  %v1893 = vpop.f32.mrb[0].mxu0
  %1894 = vmatprep.mubr.f32.mxu0 0.0
  %1895 = vmatmul.mubr.f32.gmra.mrb[0].mxu0 %v1746
  %v1896 = vpop.f32.mrb[0].mxu0
  %v1897 = vadd.f32 0.0, %v1896
  %v1898 = vpop.f32.mrb[0].mxu0
  %1899 = vmatprep.mubr.f32.mxu0 0.0
  %1900 = vmatmul.mubr.f32.gmra.mrb[0].mxu0 %v1747
  %v1901 = vpop.f32.mrb[0].mxu0
  %v1902 = vadd.f32 0.0, %v1901
  %v1903 = vpop.f32.mrb[0].mxu0
  %1904 = vmatprep.mubr.f32.mxu0 0.0
  %1905 = vmatmul.mubr.f32.gmra.mrb[0].mxu0 %v1748
  %v1906 = vpop.f32.mrb[0].mxu0
  %v1907 = vadd.f32 0.0, %v1906
  %v1908 = vpop.f32.mrb[0].mxu0
  %1909 = vmatprep.mubr.f32.mxu0 0.0
  %1910 = vmatmul.mubr.f32.gmra.mrb[0].mxu0 %v1749
  %v1911 = vpop.f32.mrb[0].mxu0
  %v1912 = vadd.f32 0.0, %v1911
  %v1913 = vpop.f32.mrb[0].mxu0
  %1914 = vmatprep.mubr.f32.mxu0 0.0
  %1915 = vmatmul.mubr.f32.gmra.mrb[0].mxu0 %v1750
  %v1916 = vpop.f32.mrb[0].mxu0
  %v1917 = vadd.f32 0.0, %v1916
  %v1918 = vpop.f32.mrb[0].mxu0
  %1919 = vmatprep.mubr.f32.mxu0 0.0
  %1920 = vmatmul.mubr.f32.gmra.mrb[0].mxu0 %v1751
  %v1921 = vpop.f32.mrb[0].mxu0
  %v1922 = vadd.f32 0.0, %v1921
  %v1923 = vpop.f32.mrb[0].mxu0
  %1924 = vmatprep.mubr.f32.mxu0 0.0
  %1925 = vmatmul.mubr.f32.gmra.mrb[0].mxu0 %v1752
  %v1926 = vpop.f32.mrb[0].mxu0
  %v1927 = vadd.f32 0.0, %v1926
  %v1928 = vpop.f32.mrb[0].mxu0
  %1929 = vmatprep.mubr.f32.mxu0 0.0
  %1930 = vmatmul.mubr.f32.gmra.mrb[0].mxu0 %v1753
  %v1931 = vpop.f32.mrb[0].mxu0
  %v1932 = vadd.f32 0.0, %v1931
  %v1933 = vpop.f32.mrb[0].mxu0
  %1934 = vmatprep.mubr.f32.mxu0 0.0
  %1935 = vmatmul.mubr.f32.gmra.mrb[0].mxu0 %v1754
  %v1936 = vpop.f32.mrb[0].mxu0
  %v1937 = vadd.f32 0.0, %v1936
  %v1938 = vpop.f32.mrb[0].mxu0
  %1939 = vmatprep.mubr.f32.mxu0 0.0
  %1940 = vmatmul.mubr.f32.gmra.mrb[0].mxu0 %v1755
  %v1941 = vpop.f32.mrb[0].mxu0
  %v1942 = vadd.f32 0.0, %v1941
  %v1943 = vpop.f32.mrb[0].mxu0
  %1944 = vmatprep.mubr.f32.mxu0 0.0
  %1945 = vmatmul.mubr.f32.gmra.mrb[0].mxu0 %v1756
  %v1946 = vpop.f32.mrb[0].mxu0
  %v1947 = vadd.f32 0.0, %v1946
  %v1948 = vpop.f32.mrb[0].mxu0
  %1949 = vmatprep.mubr.f32.mxu0 0.0
  %1950 = vmatmul.mubr.f32.gmra.mrb[0].mxu0 %v1757
  %v1951 = vpop.f32.mrb[0].mxu0
  %v1952 = vadd.f32 0.0, %v1951
  %v1953 = vpop.f32.mrb[0].mxu0
  %1954 = vmatprep.mubr.f32.mxu0 0.0
  %1955 = vmatmul.mubr.f32.gmra.mrb[0].mxu0 %v1758
  %v1956 = vpop.f32.mrb[0].mxu0
  %v1957 = vadd.f32 0.0, %v1956
  %v1958 = vpop.f32.mrb[0].mxu0
  %1959 = vmatprep.mubr.f32.mxu0 0.0
  %1960 = vmatmul.mubr.f32.gmra.mrb[0].mxu0 %v1759
  %v1961 = vpop.f32.mrb[0].mxu0
  %v1962 = vadd.f32 0.0, %v1961
  %v1963 = vpop.f32.mrb[0].mxu0
  %1964 = vmatprep.mubr.f32.mxu0 0.0
  %1965 = vmatmul.mubr.f32.gmra.mrb[0].mxu0 %v1760
  %v1966 = vpop.f32.mrb[0].mxu0
  %v1967 = vadd.f32 0.0, %v1966
  %v1968 = vpop.f32.mrb[0].mxu0
  %1969 = vmatprep.mubr.f32.mxu0 0.0
  %1970 = vmatmul.mubr.f32.gmra.mrb[0].mxu0 %v1761
  %v1971 = vpop.f32.mrb[0].mxu0
  %v1972 = vadd.f32 0.0, %v1971
  %v1973 = vpop.f32.mrb[0].mxu0
  %1974 = vmatprep.mubr.f32.mxu0 0.0
  %1975 = vmatmul.mubr.f32.gmra.mrb[0].mxu0 %v1762
  %v1976 = vpop.f32.mrb[0].mxu0
  %v1977 = vadd.f32 0.0, %v1976
  %v1978 = vpop.f32.mrb[0].mxu0
  %1979 = vmatprep.mubr.f32.mxu0 0.0
  %1980 = vmatmul.mubr.f32.gmra.mrb[0].mxu0 %v1763
  %v1981 = vpop.f32.mrb[0].mxu0
  %v1982 = vadd.f32 0.0, %v1981
  %v1983 = vpop.f32.mrb[0].mxu0
  %1984 = vmatprep.mubr.f32.mxu0 0.0
  %1985 = vmatmul.mubr.f32.gmra.mrb[0].mxu0 %v1764
  %v1986 = vpop.f32.mrb[0].mxu0
  %v1987 = vadd.f32 0.0, %v1986
  %v1988 = vpop.f32.mrb[0].mxu0
  %1989 = vmatprep.mubr.f32.mxu0 0.0
  %1990 = vmatmul.mubr.f32.gmra.mrb[0].mxu0 %v1765
  %v1991 = vpop.f32.mrb[0].mxu0
  %v1992 = vadd.f32 0.0, %v1991
  %v1993 = vpop.f32.mrb[0].mxu0
  %1994 = vmatprep.mubr.f32.mxu0 0.0
  %1995 = vmatmul.mubr.f32.gmra.mrb[0].mxu0 %v1766
  %v1996 = vpop.f32.mrb[0].mxu0
  %v1997 = vadd.f32 0.0, %v1996
  %v1998 = vpop.f32.mrb[0].mxu0
  %1999 = vmatprep.mubr.f32.mxu0 0.0
  %2000 = vmatmul.mubr.f32.gmra.mrb[0].mxu0 %v1767
  %v2001 = vpop.f32.mrb[0].mxu0
  %v2002 = vadd.f32 0.0, %v2001
  %v2003 = vpop.f32.mrb[0].mxu0
  %2004 = vmatprep.mubr.f32.mxu0 0.0
  %2005 = vmatmul.mubr.f32.gmra.mrb[0].mxu0 %v1768
  %v2006 = vpop.f32.mrb[0].mxu0
  %v2007 = vadd.f32 0.0, %v2006
  %v2008 = vpop.f32.mrb[0].mxu0
  %2009 = vmatprep.mubr.f32.mxu0 0.0
  %2010 = vmatmul.mubr.f32.gmra.mrb[0].mxu0 %v1769
  %v2011 = vpop.f32.mrb[0].mxu0
  %v2012 = vadd.f32 0.0, %v2011
  %v2013 = vpop.f32.mrb[0].mxu0
  %2014 = vmatprep.mubr.f32.mxu0 0.0
  %2015 = vmatmul.mubr.f32.gmra.mrb[0].mxu0 %v1770
  %v2016 = vpop.f32.mrb[0].mxu0
  %v2017 = vadd.f32 0.0, %v2016
  %v2018 = vpop.f32.mrb[0].mxu0
  %2019 = vmatprep.mubr.f32.mxu0 0.0
  %2020 = vmatmul.mubr.f32.gmra.mrb[0].mxu0 %v1771
  %v2021 = vpop.f32.mrb[0].mxu0
  %v2022 = vadd.f32 0.0, %v2021
  %v2023 = vpop.f32.mrb[0].mxu0
  %2024 = vmatprep.mubr.f32.mxu0 0.0
  %2025 = vmatmul.mubr.f32.gmra.mrb[0].mxu0 %v1772
  %v2026 = vpop.f32.mrb[0].mxu0
  %v2027 = vadd.f32 0.0, %v2026
  %v2028 = vpop.f32.mrb[0].mxu0
  %2029 = vdwg.mxu0
  %2030 = vmatprep.subr.mxu0 0.0
  %2031 = vmatpush1.msra.mxu0 %v1773
  %2032 = vmatprep.subr.mxu0 0.0
  %2033 = vmatpush1.msra.mxu0 %v1774
  %2034 = vmatprep.subr.mxu0 0.0
  %2035 = vmatpush1.msra.mxu0 %v1775
  %2036 = vmatprep.subr.mxu0 0.0
  %2037 = vmatpush1.msra.mxu0 %v1776
  %2038 = vmatprep.subr.mxu0 0.0
  %2039 = vmatpush1.msra.mxu0 %v1777
  %2040 = vmatprep.subr.mxu0 0.0
  %2041 = vmatpush1.msra.mxu0 %v1778
  %2042 = vmatprep.subr.mxu0 0.0
  %2043 = vmatpush1.msra.mxu0 %v1779
  %2044 = vmatprep.subr.mxu0 0.0
  %2045 = vmatpush1.msra.mxu0 %v1780
  %2046 = vmatprep.subr.mxu0 0.0
  %2047 = vmatpush1.msra.mxu0 %v1781
  %2048 = vmatprep.subr.mxu0 0.0
  %2049 = vmatpush1.msra.mxu0 %v1782
  %2050 = vmatprep.subr.mxu0 0.0
  %2051 = vmatpush1.msra.mxu0 %v1783
  %2052 = vmatprep.subr.mxu0 0.0
  %2053 = vmatpush1.msra.mxu0 %v1784
  %2054 = vmatprep.subr.mxu0 0.0
  %2055 = vmatpush1.msra.mxu0 %v1785
  %2056 = vmatprep.subr.mxu0 0.0
  %2057 = vmatpush1.msra.mxu0 %v1786
  %2058 = vmatprep.subr.mxu0 0.0
  %2059 = vmatpush1.msra.mxu0 %v1787
  %2060 = vmatprep.subr.mxu0 0.0
  %2061 = vmatpush1.msra.mxu0 %v1788
  %2062 = vmatprep.subr.mxu0 0.0
  %2063 = vmatpush1.msra.mxu0 0.0
  %2064 = vmatprep.subr.mxu0 0.0
  %2065 = vmatpush1.msra.mxu0 0.0
  %2066 = vmatprep.subr.mxu0 0.0
  %2067 = vmatpush1.msra.mxu0 0.0
  %2068 = vmatprep.subr.mxu0 0.0
  %2069 = vmatpush1.msra.mxu0 0.0
  %2070 = vmatprep.subr.mxu0 0.0
  %2071 = vmatpush1.msra.mxu0 0.0
  %2072 = vmatprep.subr.mxu0 0.0
  %2073 = vmatpush1.msra.mxu0 0.0
  %2074 = vmatprep.subr.mxu0 0.0
  %2075 = vmatpush1.msra.mxu0 0.0
  %2076 = vmatprep.subr.mxu0 0.0
  %2077 = vmatpush1.msra.mxu0 0.0
  %2078 = vmatprep.subr.mxu0 0.0
  %2079 = vmatpush1.msra.mxu0 0.0
  %2080 = vmatprep.subr.mxu0 0.0
  %2081 = vmatpush1.msra.mxu0 0.0
  %2082 = vmatprep.subr.mxu0 0.0
  %2083 = vmatpush1.msra.mxu0 0.0
  %2084 = vmatprep.subr.mxu0 0.0
  %2085 = vmatpush1.msra.mxu0 0.0
  %2086 = vmatprep.subr.mxu0 0.0
  %2087 = vmatpush1.msra.mxu0 0.0
  %2088 = vmatprep.subr.mxu0 0.0
  %2089 = vmatpush1.msra.mxu0 0.0
  %2090 = vmatprep.subr.mxu0 0.0
  %2091 = vmatpush1.msra.mxu0 0.0
  %2092 = vmatprep.subr.mxu0 0.0
  %2093 = vmatpush1.msra.mxu0 0.0
  %2094 = vmatprep.mubr.f32.mxu0 0.0
  %2095 = vmatmul.mubr.f32.gmra.mrb[0].mxu0 %v205
  %v2096 = vpop.f32.mrb[0].mxu0
  %v2097 = vadd.f32 %v1872, %v2096
  %v2098 = vpop.f32.mrb[0].mxu0
  %2099 = vmatprep.mubr.f32.mxu0 0.0
  %2100 = vmatmul.mubr.f32.gmra.mrb[0].mxu0 %v206
  %v2101 = vpop.f32.mrb[0].mxu0
  %v2102 = vadd.f32 %v1877, %v2101
  %v2103 = vpop.f32.mrb[0].mxu0
  %2104 = vmatprep.mubr.f32.mxu0 0.0
  %2105 = vmatmul.mubr.f32.gmra.mrb[0].mxu0 %v207
  %v2106 = vpop.f32.mrb[0].mxu0
  %v2107 = vadd.f32 %v1882, %v2106
  %v2108 = vpop.f32.mrb[0].mxu0
  %2109 = vmatprep.mubr.f32.mxu0 0.0
  %2110 = vmatmul.mubr.f32.gmra.mrb[0].mxu0 %v208
  %v2111 = vpop.f32.mrb[0].mxu0
  %v2112 = vadd.f32 %v1887, %v2111
  %v2113 = vpop.f32.mrb[0].mxu0
  %2114 = vmatprep.mubr.f32.mxu0 0.0
  %2115 = vmatmul.mubr.f32.gmra.mrb[0].mxu0 %v209
  %v2116 = vpop.f32.mrb[0].mxu0
  %v2117 = vadd.f32 %v1892, %v2116
  %v2118 = vpop.f32.mrb[0].mxu0
  %2119 = vmatprep.mubr.f32.mxu0 0.0
  %2120 = vmatmul.mubr.f32.gmra.mrb[0].mxu0 %v210
  %v2121 = vpop.f32.mrb[0].mxu0
  %v2122 = vadd.f32 %v1897, %v2121
  %v2123 = vpop.f32.mrb[0].mxu0
  %2124 = vmatprep.mubr.f32.mxu0 0.0
  %2125 = vmatmul.mubr.f32.gmra.mrb[0].mxu0 %v211
  %v2126 = vpop.f32.mrb[0].mxu0
  %v2127 = vadd.f32 %v1902, %v2126
  %v2128 = vpop.f32.mrb[0].mxu0
  %2129 = vmatprep.mubr.f32.mxu0 0.0
  %2130 = vmatmul.mubr.f32.gmra.mrb[0].mxu0 %v212
  %v2131 = vpop.f32.mrb[0].mxu0
  %v2132 = vadd.f32 %v1907, %v2131
  %v2133 = vpop.f32.mrb[0].mxu0
  %2134 = vmatprep.mubr.f32.mxu0 0.0
  %2135 = vmatmul.mubr.f32.gmra.mrb[0].mxu0 %v213
  %v2136 = vpop.f32.mrb[0].mxu0
  %v2137 = vadd.f32 %v1912, %v2136
  %v2138 = vpop.f32.mrb[0].mxu0
  %2139 = vmatprep.mubr.f32.mxu0 0.0
  %2140 = vmatmul.mubr.f32.gmra.mrb[0].mxu0 %v214
  %v2141 = vpop.f32.mrb[0].mxu0
  %v2142 = vadd.f32 %v1917, %v2141
  %v2143 = vpop.f32.mrb[0].mxu0
  %2144 = vmatprep.mubr.f32.mxu0 0.0
  %2145 = vmatmul.mubr.f32.gmra.mrb[0].mxu0 %v215
  %v2146 = vpop.f32.mrb[0].mxu0
  %v2147 = vadd.f32 %v1922, %v2146
  %v2148 = vpop.f32.mrb[0].mxu0
  %2149 = vmatprep.mubr.f32.mxu0 0.0
  %2150 = vmatmul.mubr.f32.gmra.mrb[0].mxu0 %v216
  %v2151 = vpop.f32.mrb[0].mxu0
  %v2152 = vadd.f32 %v1927, %v2151
  %v2153 = vpop.f32.mrb[0].mxu0
  %2154 = vmatprep.mubr.f32.mxu0 0.0
  %2155 = vmatmul.mubr.f32.gmra.mrb[0].mxu0 %v217
  %v2156 = vpop.f32.mrb[0].mxu0
  %v2157 = vadd.f32 %v1932, %v2156
  %v2158 = vpop.f32.mrb[0].mxu0
  %2159 = vmatprep.mubr.f32.mxu0 0.0
  %2160 = vmatmul.mubr.f32.gmra.mrb[0].mxu0 %v218
  %v2161 = vpop.f32.mrb[0].mxu0
  %v2162 = vadd.f32 %v1937, %v2161
  %v2163 = vpop.f32.mrb[0].mxu0
  %2164 = vmatprep.mubr.f32.mxu0 0.0
  %2165 = vmatmul.mubr.f32.gmra.mrb[0].mxu0 %v219
  %v2166 = vpop.f32.mrb[0].mxu0
  %v2167 = vadd.f32 %v1942, %v2166
  %v2168 = vpop.f32.mrb[0].mxu0
  %2169 = vmatprep.mubr.f32.mxu0 0.0
  %2170 = vmatmul.mubr.f32.gmra.mrb[0].mxu0 %v220
  %v2171 = vpop.f32.mrb[0].mxu0
  %v2172 = vadd.f32 %v1947, %v2171
  %v2173 = vpop.f32.mrb[0].mxu0
  %2174 = vmatprep.mubr.f32.mxu0 0.0
  %2175 = vmatmul.mubr.f32.gmra.mrb[0].mxu0 %v221
  %v2176 = vpop.f32.mrb[0].mxu0
  %v2177 = vadd.f32 %v1952, %v2176
  %v2178 = vpop.f32.mrb[0].mxu0
  %2179 = vmatprep.mubr.f32.mxu0 0.0
  %2180 = vmatmul.mubr.f32.gmra.mrb[0].mxu0 %v222
  %v2181 = vpop.f32.mrb[0].mxu0
  %v2182 = vadd.f32 %v1957, %v2181
  %v2183 = vpop.f32.mrb[0].mxu0
  %2184 = vmatprep.mubr.f32.mxu0 0.0
  %2185 = vmatmul.mubr.f32.gmra.mrb[0].mxu0 %v223
  %v2186 = vpop.f32.mrb[0].mxu0
  %v2187 = vadd.f32 %v1962, %v2186
  %v2188 = vpop.f32.mrb[0].mxu0
  %2189 = vmatprep.mubr.f32.mxu0 0.0
  %2190 = vmatmul.mubr.f32.gmra.mrb[0].mxu0 %v224
  %v2191 = vpop.f32.mrb[0].mxu0
  %v2192 = vadd.f32 %v1967, %v2191
  %v2193 = vpop.f32.mrb[0].mxu0
  %2194 = vmatprep.mubr.f32.mxu0 0.0
  %2195 = vmatmul.mubr.f32.gmra.mrb[0].mxu0 %v225
  %v2196 = vpop.f32.mrb[0].mxu0
  %v2197 = vadd.f32 %v1972, %v2196
  %v2198 = vpop.f32.mrb[0].mxu0
  %2199 = vmatprep.mubr.f32.mxu0 0.0
  %2200 = vmatmul.mubr.f32.gmra.mrb[0].mxu0 %v226
  %v2201 = vpop.f32.mrb[0].mxu0
  %v2202 = vadd.f32 %v1977, %v2201
  %v2203 = vpop.f32.mrb[0].mxu0
  %2204 = vmatprep.mubr.f32.mxu0 0.0
  %2205 = vmatmul.mubr.f32.gmra.mrb[0].mxu0 %v227
  %v2206 = vpop.f32.mrb[0].mxu0
  %v2207 = vadd.f32 %v1982, %v2206
  %v2208 = vpop.f32.mrb[0].mxu0
  %2209 = vmatprep.mubr.f32.mxu0 0.0
  %2210 = vmatmul.mubr.f32.gmra.mrb[0].mxu0 %v228
  %v2211 = vpop.f32.mrb[0].mxu0
  %v2212 = vadd.f32 %v1987, %v2211
  %v2213 = vpop.f32.mrb[0].mxu0
  %2214 = vmatprep.mubr.f32.mxu0 0.0
  %2215 = vmatmul.mubr.f32.gmra.mrb[0].mxu0 %v229
  %v2216 = vpop.f32.mrb[0].mxu0
  %v2217 = vadd.f32 %v1992, %v2216
  %v2218 = vpop.f32.mrb[0].mxu0
  %2219 = vmatprep.mubr.f32.mxu0 0.0
  %2220 = vmatmul.mubr.f32.gmra.mrb[0].mxu0 %v230
  %v2221 = vpop.f32.mrb[0].mxu0
  %v2222 = vadd.f32 %v1997, %v2221
  %v2223 = vpop.f32.mrb[0].mxu0
  %2224 = vmatprep.mubr.f32.mxu0 0.0
  %2225 = vmatmul.mubr.f32.gmra.mrb[0].mxu0 %v231
  %v2226 = vpop.f32.mrb[0].mxu0
  %v2227 = vadd.f32 %v2002, %v2226
  %v2228 = vpop.f32.mrb[0].mxu0
  %2229 = vmatprep.mubr.f32.mxu0 0.0
  %2230 = vmatmul.mubr.f32.gmra.mrb[0].mxu0 %v232
  %v2231 = vpop.f32.mrb[0].mxu0
  %v2232 = vadd.f32 %v2007, %v2231
  %v2233 = vpop.f32.mrb[0].mxu0
  %2234 = vmatprep.mubr.f32.mxu0 0.0
  %2235 = vmatmul.mubr.f32.gmra.mrb[0].mxu0 %v233
  %v2236 = vpop.f32.mrb[0].mxu0
  %v2237 = vadd.f32 %v2012, %v2236
  %v2238 = vpop.f32.mrb[0].mxu0
  %2239 = vmatprep.mubr.f32.mxu0 0.0
  %2240 = vmatmul.mubr.f32.gmra.mrb[0].mxu0 %v234
  %v2241 = vpop.f32.mrb[0].mxu0
  %v2242 = vadd.f32 %v2017, %v2241
  %v2243 = vpop.f32.mrb[0].mxu0
  %2244 = vmatprep.mubr.f32.mxu0 0.0
  %2245 = vmatmul.mubr.f32.gmra.mrb[0].mxu0 %v235
  %v2246 = vpop.f32.mrb[0].mxu0
  %v2247 = vadd.f32 %v2022, %v2246
  %v2248 = vpop.f32.mrb[0].mxu0
  %2249 = vmatprep.mubr.f32.mxu0 0.0
  %2250 = vmatmul.mubr.f32.gmra.mrb[0].mxu0 %v236
  %v2251 = vpop.f32.mrb[0].mxu0
  %v2252 = vadd.f32 %v2027, %v2251
  %v2253 = vpop.f32.mrb[0].mxu0
  %2254 = vdwg.mxu0
  %vm2255 = vcmask 261120
  %2256 = vst.msk [vmem:[%s2] sm:$0xff] %vm2255, %v2097
  %2257 = vst.msk [vmem:[%s2 + $0x8] sm:$0xff] %vm2255, %v2102
  %2258 = vst.msk [vmem:[%s2 + $0x10] sm:$0xff] %vm2255, %v2107
  %2259 = vst.msk [vmem:[%s2 + $0x18] sm:$0xff] %vm2255, %v2112
  %2260 = vst.msk [vmem:[%s2 + $0x20] sm:$0xff] %vm2255, %v2117
  %2261 = vst.msk [vmem:[%s2 + $0x28] sm:$0xff] %vm2255, %v2122
  %2262 = vst.msk [vmem:[%s2 + $0x30] sm:$0xff] %vm2255, %v2127
  %2263 = vst.msk [vmem:[%s2 + $0x38] sm:$0xff] %vm2255, %v2132
  %2264 = vst.msk [vmem:[%s2 + $0x40] sm:$0xff] %vm2255, %v2137
  %2265 = vst.msk [vmem:[%s2 + $0x48] sm:$0xff] %vm2255, %v2142
  %2266 = vst.msk [vmem:[%s2 + $0x50] sm:$0xff] %vm2255, %v2147
  %2267 = vst.msk [vmem:[%s2 + $0x58] sm:$0xff] %vm2255, %v2152
  %2268 = vst.msk [vmem:[%s2 + $0x60] sm:$0xff] %vm2255, %v2157
  %2269 = vst.msk [vmem:[%s2 + $0x68] sm:$0xff] %vm2255, %v2162
  %2270 = vst.msk [vmem:[%s2 + $0x70] sm:$0xff] %vm2255, %v2167
  %2271 = vst.msk [vmem:[%s2 + $0x78] sm:$0xff] %vm2255, %v2172
  %2272 = vst.msk [vmem:[%s2 + $0x80] sm:$0xff] %vm2255, %v2177
  %2273 = vst.msk [vmem:[%s2 + $0x88] sm:$0xff] %vm2255, %v2182
  %2274 = vst.msk [vmem:[%s2 + $0x90] sm:$0xff] %vm2255, %v2187
  %2275 = vst.msk [vmem:[%s2 + $0x98] sm:$0xff] %vm2255, %v2192
  %2276 = vst.msk [vmem:[%s2 + $0xa0] sm:$0xff] %vm2255, %v2197
  %2277 = vst.msk [vmem:[%s2 + $0xa8] sm:$0xff] %vm2255, %v2202
  %2278 = vst.msk [vmem:[%s2 + $0xb0] sm:$0xff] %vm2255, %v2207
  %2279 = vst.msk [vmem:[%s2 + $0xb8] sm:$0xff] %vm2255, %v2212
  %2280 = vst.msk [vmem:[%s2 + $0xc0] sm:$0xff] %vm2255, %v2217
  %2281 = vst.msk [vmem:[%s2 + $0xc8] sm:$0xff] %vm2255, %v2222
  %2282 = vst.msk [vmem:[%s2 + $0xd0] sm:$0xff] %vm2255, %v2227
  %2283 = vst.msk [vmem:[%s2 + $0xd8] sm:$0xff] %vm2255, %v2232
  %2284 = vst.msk [vmem:[%s2 + $0xe0] sm:$0xff] %vm2255, %v2237
  %2285 = vst.msk [vmem:[%s2 + $0xe8] sm:$0xff] %vm2255, %v2242
  %2286 = vst.msk [vmem:[%s2 + $0xf0] sm:$0xff] %vm2255, %v2247
  %2287 = vst.msk [vmem:[%s2 + $0xf8] sm:$0xff] %vm2255, %v2252
  // Predicated region
  $region10: #{tpu_custom_call.1} parent=0 // pred_check
    _
  $region11: #{tpu_custom_call.1} parent=0 // pred_check_branch
    %2289 = sbr.rel (0) target = $region13
  $region12: #{tpu_custom_call.1} parent=0 // pred_region
    _
  $region13: #{tpu_custom_call.1} parent=0 // pred_fallthru
    _
  // Predicated region
  $region14: #{tpu_custom_call.1} parent=0 // pred_check
    _
  $region15: #{tpu_custom_call.1} parent=0 // pred_check_branch
    %2291 = sbr.rel (0) target = $region17
  $region16: #{tpu_custom_call.1} parent=0 // pred_region
    _
  $region17: #{tpu_custom_call.1} parent=0 // pred_fallthru
    _

</llo_original>
